<compile_context>
chip_gen: v5e
topology: v5e:2x2
jax: 0.10.0
libtpu: 0.0.40
codegen_flags: <defaults>
</compile_context>

<pallas_src>
import jax
import jax.numpy as jnp
from jax import lax
from jax.experimental import pallas as pl
from jax.experimental.pallas import tpu as pltpu


# Feature widths (lane axis).  _F_IN is the REAL unpadded input width so the
# first matmul's K matches the unpadded x tile exactly.
_F_IN = 81      # 1*9*9 input pixels (K of matmul #1, NOT padded)
_F_H1 = 512     # 441 real (9*7*7 conv1 features, NCHW-flattened)
_F_H2 = 512     # 450 real (18*5*5 conv2 features, NCHW-flattened)
_F_H3 = 128     # 50  real (fc1 features)
_F_OUT = 128    # 2   real (fc2 logits)


def _sim2net_kernel(x_ref, w1_ref, b1_ref, w2_ref, b2_ref,
                    w3_ref, b3_ref, w4_ref, b4_ref, out_ref):
    # x_ref  : (block_n, 81) f32, batch on sublanes / features on lanes.
    # wK     : bf16 dense operators (convs folded to dense, flatten baked in).
    # bK     : (1, F) f32 biases.
    # out_ref: (block_n, 128) f32, real logits in columns 0:2.
    #
    # conv1 (as dense op): bf16 MXU matmul, f32 accumulate; bias+ReLU in f32.
    x = x_ref[...].astype(jnp.bfloat16)
    h = jnp.dot(x, w1_ref[...], preferred_element_type=jnp.float32)
    h = jnp.maximum(h + b1_ref[...], 0.0)
    # conv2 (as dense op); Dropout2d is identity in eval mode.
    # TODO(synk): training-mode Dropout2d / F.dropout not implemented (eval only).
    h = jnp.dot(h.astype(jnp.bfloat16), w2_ref[...],
                preferred_element_type=jnp.float32)
    h = jnp.maximum(h + b2_ref[...], 0.0)
    # flatten is baked into the dense-operator column order -> fc1 + ReLU.
    h = jnp.dot(h.astype(jnp.bfloat16), w3_ref[...],
                preferred_element_type=jnp.float32)
    h = jnp.maximum(h + b3_ref[...], 0.0)
    # fc2 (lane-dense 128-wide store; real logits sliced in the wrapper).
    out_ref[...] = (
        jnp.dot(h.astype(jnp.bfloat16), w4_ref[...],
                preferred_element_type=jnp.float32) + b4_ref[...]
    )


# --------------------------------------------------------------------------
# One-time parameter preparation (outside the per-call path).
# --------------------------------------------------------------------------
def _conv_as_dense(w, b, in_chw):
    """Materialize a VALID conv as a dense (Cin*Hi*Wi, Cout*Ho*Wo) matrix plus a
    full-length bias, both in NCHW-flattened order.  Pure weight re-layout:
    the conv is applied to the identity basis, never to activations."""
    cin, hi, wi = in_chw
    eye = jnp.eye(cin * hi * wi, dtype=jnp.float32).reshape(-1, cin, hi, wi)
    out = lax.conv_general_dilated(
        eye, w.astype(jnp.float32), (1, 1), "VALID",
        dimension_numbers=("NCHW", "OIHW", "NCHW"))          # (K, Cout, Ho, Wo)
    _, cout, ho, wo = out.shape
    dense = out.reshape(cin * hi * wi, cout * ho * wo)
    bias_full = jnp.repeat(b.astype(jnp.float32), ho * wo)   # NCHW order
    return dense, bias_full


def _pad_mat(m, rows, cols, dtype):
    z = jnp.zeros((rows, cols), jnp.float32).at[:m.shape[0], :m.shape[1]].set(m)
    return z.astype(dtype)


def _pad_vec(v, cols):
    return jnp.zeros((1, cols), jnp.float32).at[0, :v.shape[0]].set(
        v.astype(jnp.float32))


def prepare_params(params):
    """Fold convs into dense operators, fold the NCHW flatten into the fc1
    weight ordering, zero-pad output dims to lane-dense 128-multiples, cast the
    matmul operands to bf16 (biases stay f32)."""
    w1d, b1d = _conv_as_dense(params["conv1_w"], params["conv1_b"], (1, 9, 9))  # (81, 441)
    w2d, b2d = _conv_as_dense(params["conv2_w"], params["conv2_b"], (9, 7, 7))  # (441, 450)
    w3d = params["fc1_w"].T.astype(jnp.float32)               # (450, 50)
    w4d = params["fc2_w"].T.astype(jnp.float32)               # (50, 2)
    return (
        _pad_mat(w1d, _F_IN, _F_H1, jnp.bfloat16), _pad_vec(b1d, _F_H1),
        _pad_mat(w2d, _F_H1, _F_H2, jnp.bfloat16), _pad_vec(b2d, _F_H2),
        _pad_mat(w3d, _F_H2, _F_H3, jnp.bfloat16), _pad_vec(params["fc1_b"], _F_H3),
        _pad_mat(w4d, _F_H3, _F_OUT, jnp.bfloat16), _pad_vec(params["fc2_b"], _F_OUT),
    )


# --------------------------------------------------------------------------
# Forward pass.
# --------------------------------------------------------------------------
def _pick_block_n(n):
    """Batch tile size: up to 1024 rows (amortize ~0.35us/step), at least two
    grid steps when the batch allows it (both v7x TensorCores busy), sublane
    multiple of 8 (or the full tiny batch, which is always a legal block)."""
    if n <= 8:
        return n
    half = ((pl.cdiv(n, 2) + 7) // 8) * 8     # ~n/2 rounded up to a sublane multiple
    return min(1024, half)


@jax.jit
def sim2net_forward(x_nchw, prep):
    n = x_nchw.shape[0]
    assert x_nchw.shape[1:] == (1, 9, 9), x_nchw.shape
    # Contiguous NCHW -> (n, 81) flatten is free; no padded HBM copy of x.
    x_flat = x_nchw.reshape(n, _F_IN).astype(jnp.float32)

    block_n = _pick_block_n(n)
    (w1, b1, w2, b2, w3, b3, w4, b4) = prep

    const = lambda rows, cols: pl.BlockSpec((rows, cols), lambda i: (0, 0))
    out_padded = pl.pallas_call(
        _sim2net_kernel,
        out_shape=jax.ShapeDtypeStruct((n, _F_OUT), jnp.float32),
        grid=(pl.cdiv(n, block_n),),
        in_specs=[
            pl.BlockSpec((block_n, _F_IN), lambda i: (i, 0)),   # x tile (81 = full dim)
            const(_F_IN, _F_H1), const(1, _F_H1),               # conv1 dense (bf16) + bias
            const(_F_H1, _F_H2), const(1, _F_H2),               # conv2 dense (bf16) + bias
            const(_F_H2, _F_H3), const(1, _F_H3),               # fc1 (bf16) + bias
            const(_F_H3, _F_OUT), const(1, _F_OUT),             # fc2 (bf16) + bias
        ],
        out_specs=pl.BlockSpec((block_n, _F_OUT), lambda i: (i, 0)),
        compiler_params=pltpu.CompilerParams(
            dimension_semantics=("parallel",),
            vmem_limit_bytes=32 * 1024 * 1024),
    )(x_flat, w1, b1, w2, b2, w3, b3, w4, b4)

    return out_padded[:, :2]


# --------------------------------------------------------------------------
# Init + pure-JAX f32 reference (eval-mode PyTorch semantics).
# --------------------------------------------------------------------------
def init_params(key):
    ks = jax.random.split(key, 8)

    def u(k, shape, fan_in):
        bound = 1.0 / jnp.sqrt(jnp.float32(fan_in))
        return jax.random.uniform(k, shape, jnp.float32, -bound, bound)

    return {
        "conv1_w": u(ks[0], (9, 1, 3, 3), 9.0),
        "conv1_b": u(ks[1], (9,), 9.0),
        "conv2_w": u(ks[2], (18, 9, 3, 3), 81.0),
        "conv2_b": u(ks[3], (18,), 81.0),
        "fc1_w": u(ks[4], (50, 450), 450.0),
        "fc1_b": u(ks[5], (50,), 450.0),
        "fc2_w": u(ks[6], (2, 50), 50.0),
        "fc2_b": u(ks[7], (2,), 50.0),
    }


def reference_forward(x_nchw, params):
    dn = ("NCHW", "OIHW", "NCHW")
    y = lax.conv_general_dilated(x_nchw, params["conv1_w"], (1, 1), "VALID",
                                 dimension_numbers=dn)
    y = jnp.maximum(y + params["conv1_b"].reshape(1, 9, 1, 1), 0.0)
    y = lax.conv_general_dilated(y, params["conv2_w"], (1, 1), "VALID",
                                 dimension_numbers=dn)
    y = jnp.maximum(y + params["conv2_b"].reshape(1, 18, 1, 1), 0.0)
    y = y.reshape(y.shape[0], 450)
    y = jnp.maximum(y @ params["fc1_w"].T + params["fc1_b"], 0.0)
    return y @ params["fc2_w"].T + params["fc2_b"]


if __name__ == "__main__":
    key = jax.random.PRNGKey(0)
    pkey, xkey, xkey2 = jax.random.split(key, 3)
    params = init_params(pkey)
    prep = prepare_params(params)          # one-time weight re-layout / bf16 cast

    # Tolerance is loosened vs the pure-f32 version because the matmul operands
    # are bf16 (accumulation stays f32).
    TOL = 5e-2

    # Small batch (single tile, full-extent block).
    x = jax.random.normal(xkey, (2, 1, 9, 9), dtype=jnp.float32)
    out = jax.block_until_ready(sim2net_forward(x, prep))
    assert out.shape == (2, 2), out.shape
    ref = reference_forward(x, params)
    assert jnp.allclose(out, ref, atol=TOL, rtol=TOL), (out, ref)

    # Larger batch exercising the multi-step batch grid + ragged last tile.
    x2 = jax.random.normal(xkey2, (300, 1, 9, 9), dtype=jnp.float32)
    out2 = jax.block_until_ready(sim2net_forward(x2, prep))
    ref2 = reference_forward(x2, params)
    assert out2.shape == (300, 2), out2.shape
    assert jnp.allclose(out2, ref2, atol=TOL, rtol=TOL)

    print("KERNEL_OK")
</pallas_src>

<mosaic_0001>
module attributes {stable_mosaic.version = 11 : i64} {
  func.func @_sim2net_kernel(%arg0: i32, %arg1: memref<2x81xf32, #tpu.memory_space<vmem>>, %arg2: memref<81x512xbf16, #tpu.memory_space<vmem>>, %arg3: memref<1x512xf32, #tpu.memory_space<vmem>>, %arg4: memref<512x512xbf16, #tpu.memory_space<vmem>>, %arg5: memref<1x512xf32, #tpu.memory_space<vmem>>, %arg6: memref<512x128xbf16, #tpu.memory_space<vmem>>, %arg7: memref<1x128xf32, #tpu.memory_space<vmem>>, %arg8: memref<128x128xbf16, #tpu.memory_space<vmem>>, %arg9: memref<1x128xf32, #tpu.memory_space<vmem>>, %arg10: memref<2x128xf32, #tpu.memory_space<vmem>>) attributes {dimension_semantics = [#tpu.dimension_semantics<parallel>], iteration_bounds = array<i64: 1>, scalar_prefetch = 0 : i64, scratch_operands = 0 : i64, tpu.core_type = #tpu.core_type<tc>, window_params = [{transform_indices = @transform_0, window_bounds = array<i64: 2, 81>}, {pipeline_mode = #tpu.pipeline_mode<synchronous>, transform_indices = @transform_1, window_bounds = array<i64: 81, 512>}, {pipeline_mode = #tpu.pipeline_mode<synchronous>, transform_indices = @transform_2, window_bounds = array<i64: 1, 512>}, {pipeline_mode = #tpu.pipeline_mode<synchronous>, transform_indices = @transform_3, window_bounds = array<i64: 512, 512>}, {pipeline_mode = #tpu.pipeline_mode<synchronous>, transform_indices = @transform_4, window_bounds = array<i64: 1, 512>}, {pipeline_mode = #tpu.pipeline_mode<synchronous>, transform_indices = @transform_5, window_bounds = array<i64: 512, 128>}, {pipeline_mode = #tpu.pipeline_mode<synchronous>, transform_indices = @transform_6, window_bounds = array<i64: 1, 128>}, {pipeline_mode = #tpu.pipeline_mode<synchronous>, transform_indices = @transform_7, window_bounds = array<i64: 128, 128>}, {pipeline_mode = #tpu.pipeline_mode<synchronous>, transform_indices = @transform_8, window_bounds = array<i64: 1, 128>}, {transform_indices = @transform_9, window_bounds = array<i64: 2, 128>}]} {
    %c0 = arith.constant 0 : index
    %c0_0 = arith.constant 0 : index
    %0 = vector.load %arg1[%c0, %c0_0] : memref<2x81xf32, #tpu.memory_space<vmem>>, vector<2x81xf32>
    %1 = arith.truncf %0 : vector<2x81xf32> to vector<2x81xbf16>
    %c0_1 = arith.constant 0 : index
    %c0_2 = arith.constant 0 : index
    %2 = vector.load %arg2[%c0_1, %c0_2] : memref<81x512xbf16, #tpu.memory_space<vmem>>, vector<81x512xbf16>
    %cst = arith.constant dense<0.000000e+00> : vector<2x512xf32>
    %3 = tpu.matmul %1, %2, %cst {dimension_numbers = #tpu.dot_dimension_numbers<[1], [0], [0], [1], [0, 0, 1, 1], [], []>} : vector<2x81xbf16>, vector<81x512xbf16>, vector<2x512xf32> -> vector<2x512xf32>
    %c0_3 = arith.constant 0 : index
    %c0_4 = arith.constant 0 : index
    %4 = vector.load %arg3[%c0_3, %c0_4] : memref<1x512xf32, #tpu.memory_space<vmem>>, vector<1x512xf32>
    %5 = vector.broadcast %4 : vector<1x512xf32> to vector<2x512xf32>
    %6 = arith.addf %3, %5 : vector<2x512xf32>
    %cst_5 = arith.constant 0.000000e+00 : f32
    %7 = vector.broadcast %cst_5 : f32 to vector<2x512xf32>
    %8 = arith.maximumf %6, %7 : vector<2x512xf32>
    %9 = arith.truncf %8 : vector<2x512xf32> to vector<2x512xbf16>
    %c0_6 = arith.constant 0 : index
    %c0_7 = arith.constant 0 : index
    %10 = vector.load %arg4[%c0_6, %c0_7] : memref<512x512xbf16, #tpu.memory_space<vmem>>, vector<512x512xbf16>
    %cst_8 = arith.constant dense<0.000000e+00> : vector<2x512xf32>
    %11 = tpu.matmul %9, %10, %cst_8 {dimension_numbers = #tpu.dot_dimension_numbers<[1], [0], [0], [1], [0, 0, 1, 1], [], []>} : vector<2x512xbf16>, vector<512x512xbf16>, vector<2x512xf32> -> vector<2x512xf32>
    %c0_9 = arith.constant 0 : index
    %c0_10 = arith.constant 0 : index
    %12 = vector.load %arg5[%c0_9, %c0_10] : memref<1x512xf32, #tpu.memory_space<vmem>>, vector<1x512xf32>
    %13 = vector.broadcast %12 : vector<1x512xf32> to vector<2x512xf32>
    %14 = arith.addf %11, %13 : vector<2x512xf32>
    %cst_11 = arith.constant 0.000000e+00 : f32
    %15 = vector.broadcast %cst_11 : f32 to vector<2x512xf32>
    %16 = arith.maximumf %14, %15 : vector<2x512xf32>
    %17 = arith.truncf %16 : vector<2x512xf32> to vector<2x512xbf16>
    %c0_12 = arith.constant 0 : index
    %c0_13 = arith.constant 0 : index
    %18 = vector.load %arg6[%c0_12, %c0_13] : memref<512x128xbf16, #tpu.memory_space<vmem>>, vector<512x128xbf16>
    %cst_14 = arith.constant dense<0.000000e+00> : vector<2x128xf32>
    %19 = tpu.matmul %17, %18, %cst_14 {dimension_numbers = #tpu.dot_dimension_numbers<[1], [0], [0], [1], [0, 0, 1, 1], [], []>} : vector<2x512xbf16>, vector<512x128xbf16>, vector<2x128xf32> -> vector<2x128xf32>
    %c0_15 = arith.constant 0 : index
    %c0_16 = arith.constant 0 : index
    %20 = vector.load %arg7[%c0_15, %c0_16] : memref<1x128xf32, #tpu.memory_space<vmem>>, vector<1x128xf32>
    %21 = vector.broadcast %20 : vector<1x128xf32> to vector<2x128xf32>
    %22 = arith.addf %19, %21 : vector<2x128xf32>
    %cst_17 = arith.constant 0.000000e+00 : f32
    %23 = vector.broadcast %cst_17 : f32 to vector<2x128xf32>
    %24 = arith.maximumf %22, %23 : vector<2x128xf32>
    %25 = arith.truncf %24 : vector<2x128xf32> to vector<2x128xbf16>
    %c0_18 = arith.constant 0 : index
    %c0_19 = arith.constant 0 : index
    %26 = vector.load %arg8[%c0_18, %c0_19] : memref<128x128xbf16, #tpu.memory_space<vmem>>, vector<128x128xbf16>
    %cst_20 = arith.constant dense<0.000000e+00> : vector<2x128xf32>
    %27 = tpu.matmul %25, %26, %cst_20 {dimension_numbers = #tpu.dot_dimension_numbers<[1], [0], [0], [1], [0, 0, 1, 1], [], []>} : vector<2x128xbf16>, vector<128x128xbf16>, vector<2x128xf32> -> vector<2x128xf32>
    %c0_21 = arith.constant 0 : index
    %c0_22 = arith.constant 0 : index
    %28 = vector.load %arg9[%c0_21, %c0_22] : memref<1x128xf32, #tpu.memory_space<vmem>>, vector<1x128xf32>
    %29 = vector.broadcast %28 : vector<1x128xf32> to vector<2x128xf32>
    %30 = arith.addf %27, %29 : vector<2x128xf32>
    %c0_23 = arith.constant 0 : index
    %c0_24 = arith.constant 0 : index
    %31 = vector.load %arg10[%c0_23, %c0_24] : memref<2x128xf32, #tpu.memory_space<vmem>>, vector<2x128xf32>
    tpu.vector_store %arg10[%c0_23, %c0_24], %30 {strides = array<i32>} : memref<2x128xf32, #tpu.memory_space<vmem>>, vector<2x128xf32>,
    return
  }
  func.func @transform_0(%arg0: i32) -> (i32, i32) {
    %c0_i32 = arith.constant 0 : i32
    %c0_i32_0 = arith.constant 0 : i32
    return %arg0, %c0_i32 : i32, i32
  }
  func.func @transform_1(%arg0: i32) -> (i32, i32) {
    %c0_i32 = arith.constant 0 : i32
    %c0_i32_0 = arith.constant 0 : i32
    %c0_i32_1 = arith.constant 0 : i32
    return %c0_i32, %c0_i32_0 : i32, i32
  }
  func.func @transform_2(%arg0: i32) -> (i32, i32) {
    %c0_i32 = arith.constant 0 : i32
    %c0_i32_0 = arith.constant 0 : i32
    %c0_i32_1 = arith.constant 0 : i32
    return %c0_i32, %c0_i32_0 : i32, i32
  }
  func.func @transform_3(%arg0: i32) -> (i32, i32) {
    %c0_i32 = arith.constant 0 : i32
    %c0_i32_0 = arith.constant 0 : i32
    %c0_i32_1 = arith.constant 0 : i32
    return %c0_i32, %c0_i32_0 : i32, i32
  }
  func.func @transform_4(%arg0: i32) -> (i32, i32) {
    %c0_i32 = arith.constant 0 : i32
    %c0_i32_0 = arith.constant 0 : i32
    %c0_i32_1 = arith.constant 0 : i32
    return %c0_i32, %c0_i32_0 : i32, i32
  }
  func.func @transform_5(%arg0: i32) -> (i32, i32) {
    %c0_i32 = arith.constant 0 : i32
    %c0_i32_0 = arith.constant 0 : i32
    %c0_i32_1 = arith.constant 0 : i32
    return %c0_i32, %c0_i32_0 : i32, i32
  }
  func.func @transform_6(%arg0: i32) -> (i32, i32) {
    %c0_i32 = arith.constant 0 : i32
    %c0_i32_0 = arith.constant 0 : i32
    %c0_i32_1 = arith.constant 0 : i32
    return %c0_i32, %c0_i32_0 : i32, i32
  }
  func.func @transform_7(%arg0: i32) -> (i32, i32) {
    %c0_i32 = arith.constant 0 : i32
    %c0_i32_0 = arith.constant 0 : i32
    %c0_i32_1 = arith.constant 0 : i32
    return %c0_i32, %c0_i32_0 : i32, i32
  }
  func.func @transform_8(%arg0: i32) -> (i32, i32) {
    %c0_i32 = arith.constant 0 : i32
    %c0_i32_0 = arith.constant 0 : i32
    %c0_i32_1 = arith.constant 0 : i32
    return %c0_i32, %c0_i32_0 : i32, i32
  }
  func.func @transform_9(%arg0: i32) -> (i32, i32) {
    %c0_i32 = arith.constant 0 : i32
    %c0_i32_0 = arith.constant 0 : i32
    return %arg0, %c0_i32 : i32, i32
  }
}

</mosaic_0001>

<llo_original>
// kernel: sim2net_forward.1
$region0: #{sim2net_forward.1}
  #allocation0 [shape = 'u32[]', space=smem, size = 0x4, offset = 0x4, fixed_abs, tag = 'smem constant byte address 0x4 - core index']
  #allocation1 [shape = 'u32[72,128]{1,0:T(1,128)}', space=vmem, size = 0x9000, scoped, tag = 'internal scratch']
  %s0 = inlined_call_operand.vmem [shape: f32[2,81], index: 0, kind: input, shape index: {}]
  %s1 = inlined_call_operand.hbm [shape: bf16[81,512], index: 1, kind: input, shape index: {}]
  %s2 = inlined_call_operand.vmem [shape: f32[1,512], index: 2, kind: input, shape index: {}]
  %s3 = inlined_call_operand.hbm [shape: bf16[512,512], index: 3, kind: input, shape index: {}]
  %s4 = inlined_call_operand.vmem [shape: f32[1,512], index: 4, kind: input, shape index: {}]
  %s5 = inlined_call_operand.hbm [shape: bf16[512,128], index: 5, kind: input, shape index: {}]
  %s6 = inlined_call_operand.vmem [shape: f32[1,128], index: 6, kind: input, shape index: {}]
  %s7 = inlined_call_operand.vmem [shape: bf16[128,128], index: 7, kind: input, shape index: {}]
  %s8 = inlined_call_operand.vmem [shape: f32[1,128], index: 8, kind: input, shape index: {}]
  %s9 = inlined_call_operand.hbm [shape: f32[2,128], index: 9, kind: output, shape index: {}]
  %s10 = sld [smem:[#allocation0]]
  $region58: #{sim2net_forward.1} parent=0
    _
  %s12 = ssub.s32 1, %s10
  %s13 = scalar_select 0, %s12, %s10
  $region1: #{sim2net_forward.1} parent=0
    #allocation2 [shape = 'u8[90112]{0}', space=vmem, size = 0x16000, scoped, tag = 'input window, operand 1, single buffered']
    #allocation3 [shape = 's32[1]{0}', space=sflag, size = 0x4, scoped, tag = 'scoped memory for sim2net_forward.1']
    #allocation4 [shape = 's32[1]{0}', space=sflag, size = 0x4, scoped, tag = 'scoped memory for sim2net_forward.1']
    #allocation5 [shape = 'u8[524288]{0}', space=vmem, size = 0x80000, scoped, tag = 'input window, operand 3, single buffered']
    #allocation6 [shape = 's32[1]{0}', space=sflag, size = 0x4, scoped, tag = 'scoped memory for sim2net_forward.1']
    #allocation7 [shape = 'u8[131072]{0}', space=vmem, size = 0x20000, scoped, tag = 'input window, operand 5, single buffered']
    #allocation8 [shape = 'u8[1024]{0}', space=vmem, size = 0x400, scoped, tag = 'output window, operand 0, single buffered']
    %14 = vsyncpa [#allocation3], 0
    %15 = vsyncpa [#allocation6], 0
    %16 = vsyncpa [#allocation4], 0
    // Predicated region
    $region2: #{sim2net_forward.1} parent=1 // pred_check
      _
    $region3: #{sim2net_forward.1} parent=1 // pred_check_branch
      %18 = sbr.rel (0) target = $region5
    $region4: #{sim2net_forward.1} parent=1 // pred_region
      _
    $region5: #{sim2net_forward.1} parent=1 // pred_fallthru
      _
    // Predicated region
    $region6: #{sim2net_forward.1} parent=1 // pred_check
      _
    $region7: #{sim2net_forward.1} parent=1 // pred_check_branch
      %20 = sbr.rel (0) target = $region9
    $region8: #{sim2net_forward.1} parent=1 // pred_region
      %22 = vsyncadd [#allocation3], 0
      %s23 = sshll.u32 %s1, 4
      %s24 = int_to_ptr.hbm [resolvable:$true] %s23
      %s25 = sshll.u32 [#allocation2], 4
      %s26 = int_to_ptr.vmem [resolvable:$true] %s25
      %31 = dma.hbm_to_vmem [thread:$0]  %s24, 2816, %s26, [#allocation3], 256, 256, 16
    $region9: #{sim2net_forward.1} parent=1 // pred_fallthru
      _
    // Predicated region
    $region10: #{sim2net_forward.1} parent=1 // pred_check
      _
    $region11: #{sim2net_forward.1} parent=1 // pred_check_branch
      %33 = sbr.rel (0) target = $region13
    $region12: #{sim2net_forward.1} parent=1 // pred_region
      _
    $region13: #{sim2net_forward.1} parent=1 // pred_fallthru
      _
    // Predicated region
    $region14: #{sim2net_forward.1} parent=1 // pred_check
      _
    $region15: #{sim2net_forward.1} parent=1 // pred_check_branch
      %35 = sbr.rel (0) target = $region17
    $region16: #{sim2net_forward.1} parent=1 // pred_region
      %37 = vsyncadd [#allocation6], 0
      %s38 = sshll.u32 %s3, 4
      %s39 = int_to_ptr.hbm [resolvable:$true] %s38
      %s40 = sshll.u32 [#allocation5], 4
      %s41 = int_to_ptr.vmem [resolvable:$true] %s40
      %46 = dma.hbm_to_vmem [thread:$0]  %s39, 16384, %s41, [#allocation6], 256, 256, 16
    $region17: #{sim2net_forward.1} parent=1 // pred_fallthru
      _
    // Predicated region
    $region18: #{sim2net_forward.1} parent=1 // pred_check
      _
    $region19: #{sim2net_forward.1} parent=1 // pred_check_branch
      %48 = sbr.rel (0) target = $region21
    $region20: #{sim2net_forward.1} parent=1 // pred_region
      _
    $region21: #{sim2net_forward.1} parent=1 // pred_fallthru
      _
    // Predicated region
    $region22: #{sim2net_forward.1} parent=1 // pred_check
      _
    $region23: #{sim2net_forward.1} parent=1 // pred_check_branch
      %50 = sbr.rel (0) target = $region25
    $region24: #{sim2net_forward.1} parent=1 // pred_region
      %52 = vsyncadd [#allocation6], 0
      %s53 = sshll.u32 %s5, 4
      %s54 = int_to_ptr.hbm [resolvable:$true] %s53
      %s55 = sshll.u32 [#allocation7], 4
      %s56 = int_to_ptr.vmem [resolvable:$true] %s55
      %61 = dma.hbm_to_vmem [thread:$0]  %s54, 4096, %s56, [#allocation6], 64, 64, 4
    $region25: #{sim2net_forward.1} parent=1 // pred_fallthru
      _
    // Predicated region
    $region26: #{sim2net_forward.1} parent=1 // pred_check
      _
    $region27: #{sim2net_forward.1} parent=1 // pred_check_branch
      %63 = sbr.rel (0) target = $region29
    $region28: #{sim2net_forward.1} parent=1 // pred_region
      _
    $region29: #{sim2net_forward.1} parent=1 // pred_fallthru
      _
    // Predicated region
    $region30: #{sim2net_forward.1} parent=1 // pred_check
      _
    $region31: #{sim2net_forward.1} parent=1 // pred_check_branch
      %65 = sbr.rel (0) target = $region33
    $region32: #{sim2net_forward.1} parent=1 // pred_region
      _
    $region33: #{sim2net_forward.1} parent=1 // pred_fallthru
      _
    // Predicated region
    $region34: #{sim2net_forward.1} parent=1 // pred_check
      _
    $region35: #{sim2net_forward.1} parent=1 // pred_check_branch
      %67 = sbr.rel (0) target = $region37
    $region36: #{sim2net_forward.1} parent=1 // pred_region
      _
    $region37: #{sim2net_forward.1} parent=1 // pred_fallthru
      _
    // Predicated region
    $region38: #{sim2net_forward.1} parent=1 // pred_check
      _
    $region39: #{sim2net_forward.1} parent=1 // pred_check_branch
      %69 = sbr.rel (0) target = $region41
    $region40: #{sim2net_forward.1} parent=1 // pred_region
      %71 = dma.done [#allocation3], 2816
    $region41: #{sim2net_forward.1} parent=1 // pred_fallthru
      _
    // Predicated region
    $region42: #{sim2net_forward.1} parent=1 // pred_check
      _
    $region43: #{sim2net_forward.1} parent=1 // pred_check_branch
      %73 = sbr.rel (0) target = $region45
    $region44: #{sim2net_forward.1} parent=1 // pred_region
      %75 = dma.done [#allocation6], 16384
    $region45: #{sim2net_forward.1} parent=1 // pred_fallthru
      _
    // Predicated region
    $region46: #{sim2net_forward.1} parent=1 // pred_check
      _
    $region47: #{sim2net_forward.1} parent=1 // pred_check_branch
      %77 = sbr.rel (0) target = $region49
    $region48: #{sim2net_forward.1} parent=1 // pred_region
      %79 = dma.done [#allocation6], 4096
    $region49: #{sim2net_forward.1} parent=1 // pred_fallthru
      _
    %v81 = vld [vmem:[%s0] sm:$0x3]
    %v82 = vpack.c.bf16 %v81, %v81
    %v83 = vld [vmem:[#allocation2] sm:$0xff]
    %v84 = vld [vmem:[#allocation2 + $0x8] sm:$0xff]
    %v85 = vld [vmem:[#allocation2 + $0x10] sm:$0xff]
    %v86 = vld [vmem:[#allocation2 + $0x18] sm:$0xff]
    %v87 = vld [vmem:[#allocation2 + $0x20] sm:$0xff]
    %v88 = vld [vmem:[#allocation2 + $0x28] sm:$0xff]
    %v89 = vld [vmem:[#allocation2 + $0x30] sm:$0xff]
    %v90 = vld [vmem:[#allocation2 + $0x38] sm:$0xff]
    %v91 = vld [vmem:[#allocation2 + $0x40] sm:$0xff]
    %v92 = vld [vmem:[#allocation2 + $0x48] sm:$0xff]
    %v93 = vld [vmem:[#allocation2 + $0x50] sm:$0xff]
    %v94 = vld [vmem:[#allocation2 + $0x58] sm:$0xff]
    %v95 = vld [vmem:[#allocation2 + $0x60] sm:$0xff]
    %v96 = vld [vmem:[#allocation2 + $0x68] sm:$0xff]
    %v97 = vld [vmem:[#allocation2 + $0x70] sm:$0xff]
    %v98 = vld [vmem:[#allocation2 + $0x78] sm:$0xff]
    %v99 = vld [vmem:[#allocation2 + $0x80] sm:$0xff]
    %v100 = vld [vmem:[#allocation2 + $0x88] sm:$0xff]
    %v101 = vld [vmem:[#allocation2 + $0x90] sm:$0xff]
    %v102 = vld [vmem:[#allocation2 + $0x98] sm:$0xff]
    %v103 = vld [vmem:[#allocation2 + $0xa0] sm:$0x11]
    %v104 = vld [vmem:[#allocation2 + $0xa8] sm:$0x11]
    %v105 = vld [vmem:[%s2] sm:$0xf]
    %v107 = vperm.slane %v105, 0
    %v108 = vperm.slane %v105, 1
    %v109 = vperm.slane %v105, 2
    %v110 = vperm.slane %v105, 3
    %v137 = vunpack.c.l.b16 %v83
    %v138 = vunpack.c.h.b16 %v83
    %v139 = vunpack.c.l.b16 %v84
    %v140 = vunpack.c.h.b16 %v84
    %v141 = vunpack.c.l.b16 %v85
    %v142 = vunpack.c.h.b16 %v85
    %v143 = vunpack.c.l.b16 %v86
    %v144 = vunpack.c.h.b16 %v86
    %v145 = vunpack.c.l.b16 %v87
    %v146 = vunpack.c.h.b16 %v87
    %v147 = vunpack.c.l.b16 %v88
    %v148 = vunpack.c.h.b16 %v88
    %v149 = vunpack.c.l.b16 %v89
    %v150 = vunpack.c.h.b16 %v89
    %v151 = vunpack.c.l.b16 %v90
    %v152 = vunpack.c.h.b16 %v90
    %v153 = vunpack.c.l.b16 %v91
    %v154 = vunpack.c.h.b16 %v91
    %v155 = vunpack.c.l.b16 %v92
    %v156 = vunpack.c.h.b16 %v92
    %v157 = vunpack.c.l.b16 %v93
    %v158 = vunpack.c.h.b16 %v93
    %v159 = vunpack.c.l.b16 %v94
    %v160 = vunpack.c.h.b16 %v94
    %v161 = vunpack.c.l.b16 %v95
    %v162 = vunpack.c.h.b16 %v95
    %v163 = vunpack.c.l.b16 %v96
    %v164 = vunpack.c.h.b16 %v96
    %v165 = vunpack.c.l.b16 %v97
    %v166 = vunpack.c.h.b16 %v97
    %v167 = vunpack.c.l.b16 %v98
    %v168 = vunpack.c.h.b16 %v98
    %v169 = vunpack.c.l.b16 %v99
    %v170 = vunpack.c.h.b16 %v99
    %v171 = vunpack.c.l.b16 %v100
    %v172 = vunpack.c.h.b16 %v100
    %v173 = vunpack.c.l.b16 %v101
    %v174 = vunpack.c.h.b16 %v101
    %v175 = vunpack.c.l.b16 %v102
    %v176 = vunpack.c.h.b16 %v102
    %v177 = vunpack.c.l.b16 %v103
    %v178 = vunpack.c.h.b16 %v103
    %v179 = vunpack.c.l.b16 %v104
    %v180 = vunpack.c.h.b16 %v104
    %v181 = vpack.c.b16 %v141, %v137
    %v182 = vpack.c.b16 %v142, %v138
    %v183 = vpack.c.b16 %v143, %v139
    %v184 = vpack.c.b16 %v144, %v140
    %v185 = vpack.c.b16 %v149, %v145
    %v186 = vpack.c.b16 %v150, %v146
    %v187 = vpack.c.b16 %v151, %v147
    %v188 = vpack.c.b16 %v152, %v148
    %v189 = vpack.c.b16 %v157, %v153
    %v190 = vpack.c.b16 %v158, %v154
    %v191 = vpack.c.b16 %v159, %v155
    %v192 = vpack.c.b16 %v160, %v156
    %v193 = vpack.c.b16 %v165, %v161
    %v194 = vpack.c.b16 %v166, %v162
    %v195 = vpack.c.b16 %v167, %v163
    %v196 = vpack.c.b16 %v168, %v164
    %v197 = vpack.c.b16 %v173, %v169
    %v198 = vpack.c.b16 %v174, %v170
    %v199 = vpack.c.b16 %v175, %v171
    %v200 = vpack.c.b16 %v176, %v172
    %v201 = vpack.c.b16 %v177, %v177
    %v202 = vpack.c.b16 %v178, %v178
    %v203 = vpack.c.b16 %v179, %v179
    %v204 = vpack.c.b16 %v180, %v180
    %vm225 = vcmask 662528
    %v227 = vsel %vm225, %v82, 0
    %vm229 = vcmask 1040384
    %v230 = vsel 0, 4294967295, 65535
    %v231 = vsel %vm229, %v230, 0
    %v233 = vand.u32 %v201, %v231
    %v236 = vand.u32 %v202, %v231
    %v239 = vand.u32 %v203, %v231
    %v242 = vand.u32 %v204, %v231
    %244 = vmatpush.bf16.msra.mxu0 0
    %245 = vmatpush.bf16.msra.mxu0 0
    %246 = vmatpush.bf16.msra.mxu0 %v233
    %247 = vmatpush.bf16.msra.mxu0 %v197
    %248 = vmatpush.bf16.msra.mxu0 %v193
    %249 = vmatpush.bf16.msra.mxu0 %v189
    %250 = vmatpush.bf16.msra.mxu0 %v185
    %251 = vmatpush.bf16.msra.mxu0 %v181
    %252 = vmatmul.bf16.gmra.mxu0 %v227
    %v253 = vpop.f32.mrf.mxu0
    %v254 = vadd.f32 %v107, %v253
    %v255 = vpop.f32.mrf.mxu0
    %256 = vdwg.mxu0
    %257 = vmatpush.bf16.msra.mxu0 0
    %258 = vmatpush.bf16.msra.mxu0 0
    %259 = vmatpush.bf16.msra.mxu0 %v236
    %260 = vmatpush.bf16.msra.mxu0 %v198
    %261 = vmatpush.bf16.msra.mxu0 %v194
    %262 = vmatpush.bf16.msra.mxu0 %v190
    %263 = vmatpush.bf16.msra.mxu0 %v186
    %264 = vmatpush.bf16.msra.mxu0 %v182
    %265 = vmatmul.bf16.gmra.mxu0 %v227
    %v266 = vpop.f32.mrf.mxu0
    %v267 = vadd.f32 %v108, %v266
    %v268 = vpop.f32.mrf.mxu0
    %269 = vdwg.mxu0
    %270 = vmatpush.bf16.msra.mxu0 0
    %271 = vmatpush.bf16.msra.mxu0 0
    %272 = vmatpush.bf16.msra.mxu0 %v239
    %273 = vmatpush.bf16.msra.mxu0 %v199
    %274 = vmatpush.bf16.msra.mxu0 %v195
    %275 = vmatpush.bf16.msra.mxu0 %v191
    %276 = vmatpush.bf16.msra.mxu0 %v187
    %277 = vmatpush.bf16.msra.mxu0 %v183
    %278 = vmatmul.bf16.gmra.mxu0 %v227
    %v279 = vpop.f32.mrf.mxu0
    %v280 = vadd.f32 %v109, %v279
    %v281 = vpop.f32.mrf.mxu0
    %282 = vdwg.mxu0
    %283 = vmatpush.bf16.msra.mxu0 0
    %284 = vmatpush.bf16.msra.mxu0 0
    %285 = vmatpush.bf16.msra.mxu0 %v242
    %286 = vmatpush.bf16.msra.mxu0 %v200
    %287 = vmatpush.bf16.msra.mxu0 %v196
    %288 = vmatpush.bf16.msra.mxu0 %v192
    %289 = vmatpush.bf16.msra.mxu0 %v188
    %290 = vmatpush.bf16.msra.mxu0 %v184
    %291 = vmatmul.bf16.gmra.mxu0 %v227
    %v292 = vpop.f32.mrf.mxu0
    %v293 = vadd.f32 %v110, %v292
    %v294 = vpop.f32.mrf.mxu0
    %295 = vdwg.mxu0
    %v296 = vmax.f32 %v254, 0.0
    %v297 = vmax.f32 %v267, 0.0
    %v298 = vmax.f32 %v280, 0.0
    %v299 = vmax.f32 %v293, 0.0
    %v300 = vpack.c.bf16 %v296, %v296
    %v301 = vpack.c.bf16 %v297, %v297
    %v302 = vpack.c.bf16 %v298, %v298
    %v303 = vpack.c.bf16 %v299, %v299
    %v304 = vld [vmem:[#allocation5] sm:$0xff]
    %v305 = vld [vmem:[#allocation5 + $0x8] sm:$0xff]
    %v306 = vld [vmem:[#allocation5 + $0x10] sm:$0xff]
    %v307 = vld [vmem:[#allocation5 + $0x18] sm:$0xff]
    %v308 = vld [vmem:[#allocation5 + $0x20] sm:$0xff]
    %v309 = vld [vmem:[#allocation5 + $0x28] sm:$0xff]
    %v310 = vld [vmem:[#allocation5 + $0x30] sm:$0xff]
    %v311 = vld [vmem:[#allocation5 + $0x38] sm:$0xff]
    %v312 = vld [vmem:[#allocation5 + $0x40] sm:$0xff]
    %v313 = vld [vmem:[#allocation5 + $0x48] sm:$0xff]
    %v314 = vld [vmem:[#allocation5 + $0x50] sm:$0xff]
    %v315 = vld [vmem:[#allocation5 + $0x58] sm:$0xff]
    %v316 = vld [vmem:[#allocation5 + $0x60] sm:$0xff]
    %v317 = vld [vmem:[#allocation5 + $0x68] sm:$0xff]
    %v318 = vld [vmem:[#allocation5 + $0x70] sm:$0xff]
    %v319 = vld [vmem:[#allocation5 + $0x78] sm:$0xff]
    %v320 = vld [vmem:[#allocation5 + $0x80] sm:$0xff]
    %v321 = vld [vmem:[#allocation5 + $0x88] sm:$0xff]
    %v322 = vld [vmem:[#allocation5 + $0x90] sm:$0xff]
    %v323 = vld [vmem:[#allocation5 + $0x98] sm:$0xff]
    %v324 = vld [vmem:[#allocation5 + $0xa0] sm:$0xff]
    %v325 = vld [vmem:[#allocation5 + $0xa8] sm:$0xff]
    %v326 = vld [vmem:[#allocation5 + $0xb0] sm:$0xff]
    %v327 = vld [vmem:[#allocation5 + $0xb8] sm:$0xff]
    %v328 = vld [vmem:[#allocation5 + $0xc0] sm:$0xff]
    %v329 = vld [vmem:[#allocation5 + $0xc8] sm:$0xff]
    %v330 = vld [vmem:[#allocation5 + $0xd0] sm:$0xff]
    %v331 = vld [vmem:[#allocation5 + $0xd8] sm:$0xff]
    %v332 = vld [vmem:[#allocation5 + $0xe0] sm:$0xff]
    %v333 = vld [vmem:[#allocation5 + $0xe8] sm:$0xff]
    %v334 = vld [vmem:[#allocation5 + $0xf0] sm:$0xff]
    %v335 = vld [vmem:[#allocation5 + $0xf8] sm:$0xff]
    %v336 = vld [vmem:[#allocation5 + $0x100] sm:$0xff]
    %v337 = vld [vmem:[#allocation5 + $0x108] sm:$0xff]
    %v338 = vld [vmem:[#allocation5 + $0x110] sm:$0xff]
    %v339 = vld [vmem:[#allocation5 + $0x118] sm:$0xff]
    %v340 = vld [vmem:[#allocation5 + $0x120] sm:$0xff]
    %v341 = vld [vmem:[#allocation5 + $0x128] sm:$0xff]
    %v342 = vld [vmem:[#allocation5 + $0x130] sm:$0xff]
    %v343 = vld [vmem:[#allocation5 + $0x138] sm:$0xff]
    %v344 = vld [vmem:[#allocation5 + $0x140] sm:$0xff]
    %v345 = vld [vmem:[#allocation5 + $0x148] sm:$0xff]
    %v346 = vld [vmem:[#allocation5 + $0x150] sm:$0xff]
    %v347 = vld [vmem:[#allocation5 + $0x158] sm:$0xff]
    %v348 = vld [vmem:[#allocation5 + $0x160] sm:$0xff]
    %v349 = vld [vmem:[#allocation5 + $0x168] sm:$0xff]
    %v350 = vld [vmem:[#allocation5 + $0x170] sm:$0xff]
    %v351 = vld [vmem:[#allocation5 + $0x178] sm:$0xff]
    %v352 = vld [vmem:[#allocation5 + $0x180] sm:$0xff]
    %v353 = vld [vmem:[#allocation5 + $0x188] sm:$0xff]
    %v354 = vld [vmem:[#allocation5 + $0x190] sm:$0xff]
    %v355 = vld [vmem:[#allocation5 + $0x198] sm:$0xff]
    %v356 = vld [vmem:[#allocation5 + $0x1a0] sm:$0xff]
    %v357 = vld [vmem:[#allocation5 + $0x1a8] sm:$0xff]
    %v358 = vld [vmem:[#allocation5 + $0x1b0] sm:$0xff]
    %v359 = vld [vmem:[#allocation5 + $0x1b8] sm:$0xff]
    %v360 = vld [vmem:[#allocation5 + $0x1c0] sm:$0xff]
    %v361 = vld [vmem:[#allocation5 + $0x1c8] sm:$0xff]
    %v362 = vld [vmem:[#allocation5 + $0x1d0] sm:$0xff]
    %v363 = vld [vmem:[#allocation5 + $0x1d8] sm:$0xff]
    %v364 = vld [vmem:[#allocation5 + $0x1e0] sm:$0xff]
    %v365 = vld [vmem:[#allocation5 + $0x1e8] sm:$0xff]
    %v366 = vld [vmem:[#allocation5 + $0x1f0] sm:$0xff]
    %v367 = vld [vmem:[#allocation5 + $0x1f8] sm:$0xff]
    %v368 = vld [vmem:[#allocation5 + $0x200] sm:$0xff]
    %v369 = vld [vmem:[#allocation5 + $0x208] sm:$0xff]
    %v370 = vld [vmem:[#allocation5 + $0x210] sm:$0xff]
    %v371 = vld [vmem:[#allocation5 + $0x218] sm:$0xff]
    %v372 = vld [vmem:[#allocation5 + $0x220] sm:$0xff]
    %v373 = vld [vmem:[#allocation5 + $0x228] sm:$0xff]
    %v374 = vld [vmem:[#allocation5 + $0x230] sm:$0xff]
    %v375 = vld [vmem:[#allocation5 + $0x238] sm:$0xff]
    %v376 = vld [vmem:[#allocation5 + $0x240] sm:$0xff]
    %v377 = vld [vmem:[#allocation5 + $0x248] sm:$0xff]
    %v378 = vld [vmem:[#allocation5 + $0x250] sm:$0xff]
    %v379 = vld [vmem:[#allocation5 + $0x258] sm:$0xff]
    %v380 = vld [vmem:[#allocation5 + $0x260] sm:$0xff]
    %v381 = vld [vmem:[#allocation5 + $0x268] sm:$0xff]
    %v382 = vld [vmem:[#allocation5 + $0x270] sm:$0xff]
    %v383 = vld [vmem:[#allocation5 + $0x278] sm:$0xff]
    %v384 = vld [vmem:[#allocation5 + $0x280] sm:$0xff]
    %v385 = vld [vmem:[#allocation5 + $0x288] sm:$0xff]
    %v386 = vld [vmem:[#allocation5 + $0x290] sm:$0xff]
    %v387 = vld [vmem:[#allocation5 + $0x298] sm:$0xff]
    %v388 = vld [vmem:[#allocation5 + $0x2a0] sm:$0xff]
    %v389 = vld [vmem:[#allocation5 + $0x2a8] sm:$0xff]
    %v390 = vld [vmem:[#allocation5 + $0x2b0] sm:$0xff]
    %v391 = vld [vmem:[#allocation5 + $0x2b8] sm:$0xff]
    %v392 = vld [vmem:[#allocation5 + $0x2c0] sm:$0xff]
    %v393 = vld [vmem:[#allocation5 + $0x2c8] sm:$0xff]
    %v394 = vld [vmem:[#allocation5 + $0x2d0] sm:$0xff]
    %v395 = vld [vmem:[#allocation5 + $0x2d8] sm:$0xff]
    %v396 = vld [vmem:[#allocation5 + $0x2e0] sm:$0xff]
    %v397 = vld [vmem:[#allocation5 + $0x2e8] sm:$0xff]
    %v398 = vld [vmem:[#allocation5 + $0x2f0] sm:$0xff]
    %v399 = vld [vmem:[#allocation5 + $0x2f8] sm:$0xff]
    %v400 = vld [vmem:[#allocation5 + $0x300] sm:$0xff]
    %v401 = vld [vmem:[#allocation5 + $0x308] sm:$0xff]
    %v402 = vld [vmem:[#allocation5 + $0x310] sm:$0xff]
    %v403 = vld [vmem:[#allocation5 + $0x318] sm:$0xff]
    %v404 = vld [vmem:[#allocation5 + $0x320] sm:$0xff]
    %v405 = vld [vmem:[#allocation5 + $0x328] sm:$0xff]
    %v406 = vld [vmem:[#allocation5 + $0x330] sm:$0xff]
    %v407 = vld [vmem:[#allocation5 + $0x338] sm:$0xff]
    %v408 = vld [vmem:[#allocation5 + $0x340] sm:$0xff]
    %v409 = vld [vmem:[#allocation5 + $0x348] sm:$0xff]
    %v410 = vld [vmem:[#allocation5 + $0x350] sm:$0xff]
    %v411 = vld [vmem:[#allocation5 + $0x358] sm:$0xff]
    %v412 = vld [vmem:[#allocation5 + $0x360] sm:$0xff]
    %v413 = vld [vmem:[#allocation5 + $0x368] sm:$0xff]
    %v414 = vld [vmem:[#allocation5 + $0x370] sm:$0xff]
    %v415 = vld [vmem:[#allocation5 + $0x378] sm:$0xff]
    %v416 = vld [vmem:[#allocation5 + $0x380] sm:$0xff]
    %v417 = vld [vmem:[#allocation5 + $0x388] sm:$0xff]
    %v418 = vld [vmem:[#allocation5 + $0x390] sm:$0xff]
    %v419 = vld [vmem:[#allocation5 + $0x398] sm:$0xff]
    %v420 = vld [vmem:[#allocation5 + $0x3a0] sm:$0xff]
    %v421 = vld [vmem:[#allocation5 + $0x3a8] sm:$0xff]
    %v422 = vld [vmem:[#allocation5 + $0x3b0] sm:$0xff]
    %v423 = vld [vmem:[#allocation5 + $0x3b8] sm:$0xff]
    %v424 = vld [vmem:[#allocation5 + $0x3c0] sm:$0xff]
    %v425 = vld [vmem:[#allocation5 + $0x3c8] sm:$0xff]
    %v426 = vld [vmem:[#allocation5 + $0x3d0] sm:$0xff]
    %v427 = vld [vmem:[#allocation5 + $0x3d8] sm:$0xff]
    %v428 = vld [vmem:[#allocation5 + $0x3e0] sm:$0xff]
    %v429 = vld [vmem:[#allocation5 + $0x3e8] sm:$0xff]
    %v430 = vld [vmem:[#allocation5 + $0x3f0] sm:$0xff]
    %v431 = vld [vmem:[#allocation5 + $0x3f8] sm:$0xff]
    %v432 = vld [vmem:[%s4] sm:$0xf]
    %v434 = vperm.slane %v432, 0
    %v435 = vperm.slane %v432, 1
    %v436 = vperm.slane %v432, 2
    %v437 = vperm.slane %v432, 3
    %v570 = vunpack.c.l.b16 %v304
    %v571 = vunpack.c.h.b16 %v304
    %v572 = vunpack.c.l.b16 %v305
    %v573 = vunpack.c.h.b16 %v305
    %v574 = vunpack.c.l.b16 %v306
    %v575 = vunpack.c.h.b16 %v306
    %v576 = vunpack.c.l.b16 %v307
    %v577 = vunpack.c.h.b16 %v307
    %v578 = vunpack.c.l.b16 %v308
    %v579 = vunpack.c.h.b16 %v308
    %v580 = vunpack.c.l.b16 %v309
    %v581 = vunpack.c.h.b16 %v309
    %v582 = vunpack.c.l.b16 %v310
    %v583 = vunpack.c.h.b16 %v310
    %v584 = vunpack.c.l.b16 %v311
    %v585 = vunpack.c.h.b16 %v311
    %v586 = vunpack.c.l.b16 %v312
    %v587 = vunpack.c.h.b16 %v312
    %v588 = vunpack.c.l.b16 %v313
    %v589 = vunpack.c.h.b16 %v313
    %v590 = vunpack.c.l.b16 %v314
    %v591 = vunpack.c.h.b16 %v314
    %v592 = vunpack.c.l.b16 %v315
    %v593 = vunpack.c.h.b16 %v315
    %v594 = vunpack.c.l.b16 %v316
    %v595 = vunpack.c.h.b16 %v316
    %v596 = vunpack.c.l.b16 %v317
    %v597 = vunpack.c.h.b16 %v317
    %v598 = vunpack.c.l.b16 %v318
    %v599 = vunpack.c.h.b16 %v318
    %v600 = vunpack.c.l.b16 %v319
    %v601 = vunpack.c.h.b16 %v319
    %v602 = vunpack.c.l.b16 %v320
    %v603 = vunpack.c.h.b16 %v320
    %v604 = vunpack.c.l.b16 %v321
    %v605 = vunpack.c.h.b16 %v321
    %v606 = vunpack.c.l.b16 %v322
    %v607 = vunpack.c.h.b16 %v322
    %v608 = vunpack.c.l.b16 %v323
    %v609 = vunpack.c.h.b16 %v323
    %v610 = vunpack.c.l.b16 %v324
    %v611 = vunpack.c.h.b16 %v324
    %v612 = vunpack.c.l.b16 %v325
    %v613 = vunpack.c.h.b16 %v325
    %v614 = vunpack.c.l.b16 %v326
    %v615 = vunpack.c.h.b16 %v326
    %v616 = vunpack.c.l.b16 %v327
    %v617 = vunpack.c.h.b16 %v327
    %v618 = vunpack.c.l.b16 %v328
    %v619 = vunpack.c.h.b16 %v328
    %v620 = vunpack.c.l.b16 %v329
    %v621 = vunpack.c.h.b16 %v329
    %v622 = vunpack.c.l.b16 %v330
    %v623 = vunpack.c.h.b16 %v330
    %v624 = vunpack.c.l.b16 %v331
    %v625 = vunpack.c.h.b16 %v331
    %v626 = vunpack.c.l.b16 %v332
    %v627 = vunpack.c.h.b16 %v332
    %v628 = vunpack.c.l.b16 %v333
    %v629 = vunpack.c.h.b16 %v333
    %v630 = vunpack.c.l.b16 %v334
    %v631 = vunpack.c.h.b16 %v334
    %v632 = vunpack.c.l.b16 %v335
    %v633 = vunpack.c.h.b16 %v335
    %v634 = vunpack.c.l.b16 %v336
    %v635 = vunpack.c.h.b16 %v336
    %v636 = vunpack.c.l.b16 %v337
    %v637 = vunpack.c.h.b16 %v337
    %v638 = vunpack.c.l.b16 %v338
    %v639 = vunpack.c.h.b16 %v338
    %v640 = vunpack.c.l.b16 %v339
    %v641 = vunpack.c.h.b16 %v339
    %v642 = vunpack.c.l.b16 %v340
    %v643 = vunpack.c.h.b16 %v340
    %v644 = vunpack.c.l.b16 %v341
    %v645 = vunpack.c.h.b16 %v341
    %v646 = vunpack.c.l.b16 %v342
    %v647 = vunpack.c.h.b16 %v342
    %v648 = vunpack.c.l.b16 %v343
    %v649 = vunpack.c.h.b16 %v343
    %v650 = vunpack.c.l.b16 %v344
    %v651 = vunpack.c.h.b16 %v344
    %v652 = vunpack.c.l.b16 %v345
    %v653 = vunpack.c.h.b16 %v345
    %v654 = vunpack.c.l.b16 %v346
    %v655 = vunpack.c.h.b16 %v346
    %v656 = vunpack.c.l.b16 %v347
    %v657 = vunpack.c.h.b16 %v347
    %v658 = vunpack.c.l.b16 %v348
    %v659 = vunpack.c.h.b16 %v348
    %v660 = vunpack.c.l.b16 %v349
    %v661 = vunpack.c.h.b16 %v349
    %v662 = vunpack.c.l.b16 %v350
    %v663 = vunpack.c.h.b16 %v350
    %v664 = vunpack.c.l.b16 %v351
    %v665 = vunpack.c.h.b16 %v351
    %v666 = vunpack.c.l.b16 %v352
    %v667 = vunpack.c.h.b16 %v352
    %v668 = vunpack.c.l.b16 %v353
    %v669 = vunpack.c.h.b16 %v353
    %v670 = vunpack.c.l.b16 %v354
    %v671 = vunpack.c.h.b16 %v354
    %v672 = vunpack.c.l.b16 %v355
    %v673 = vunpack.c.h.b16 %v355
    %v674 = vunpack.c.l.b16 %v356
    %v675 = vunpack.c.h.b16 %v356
    %v676 = vunpack.c.l.b16 %v357
    %v677 = vunpack.c.h.b16 %v357
    %v678 = vunpack.c.l.b16 %v358
    %v679 = vunpack.c.h.b16 %v358
    %v680 = vunpack.c.l.b16 %v359
    %v681 = vunpack.c.h.b16 %v359
    %v682 = vunpack.c.l.b16 %v360
    %v683 = vunpack.c.h.b16 %v360
    %v684 = vunpack.c.l.b16 %v361
    %v685 = vunpack.c.h.b16 %v361
    %v686 = vunpack.c.l.b16 %v362
    %v687 = vunpack.c.h.b16 %v362
    %v688 = vunpack.c.l.b16 %v363
    %v689 = vunpack.c.h.b16 %v363
    %v690 = vunpack.c.l.b16 %v364
    %v691 = vunpack.c.h.b16 %v364
    %v692 = vunpack.c.l.b16 %v365
    %v693 = vunpack.c.h.b16 %v365
    %v694 = vunpack.c.l.b16 %v366
    %v695 = vunpack.c.h.b16 %v366
    %v696 = vunpack.c.l.b16 %v367
    %v697 = vunpack.c.h.b16 %v367
    %v698 = vunpack.c.l.b16 %v368
    %v699 = vunpack.c.h.b16 %v368
    %v700 = vunpack.c.l.b16 %v369
    %v701 = vunpack.c.h.b16 %v369
    %v702 = vunpack.c.l.b16 %v370
    %v703 = vunpack.c.h.b16 %v370
    %v704 = vunpack.c.l.b16 %v371
    %v705 = vunpack.c.h.b16 %v371
    %v706 = vunpack.c.l.b16 %v372
    %v707 = vunpack.c.h.b16 %v372
    %v708 = vunpack.c.l.b16 %v373
    %v709 = vunpack.c.h.b16 %v373
    %v710 = vunpack.c.l.b16 %v374
    %v711 = vunpack.c.h.b16 %v374
    %v712 = vunpack.c.l.b16 %v375
    %v713 = vunpack.c.h.b16 %v375
    %v714 = vunpack.c.l.b16 %v376
    %v715 = vunpack.c.h.b16 %v376
    %v716 = vunpack.c.l.b16 %v377
    %v717 = vunpack.c.h.b16 %v377
    %v718 = vunpack.c.l.b16 %v378
    %v719 = vunpack.c.h.b16 %v378
    %v720 = vunpack.c.l.b16 %v379
    %v721 = vunpack.c.h.b16 %v379
    %v722 = vunpack.c.l.b16 %v380
    %v723 = vunpack.c.h.b16 %v380
    %v724 = vunpack.c.l.b16 %v381
    %v725 = vunpack.c.h.b16 %v381
    %v726 = vunpack.c.l.b16 %v382
    %v727 = vunpack.c.h.b16 %v382
    %v728 = vunpack.c.l.b16 %v383
    %v729 = vunpack.c.h.b16 %v383
    %v730 = vunpack.c.l.b16 %v384
    %v731 = vunpack.c.h.b16 %v384
    %v732 = vunpack.c.l.b16 %v385
    %v733 = vunpack.c.h.b16 %v385
    %v734 = vunpack.c.l.b16 %v386
    %v735 = vunpack.c.h.b16 %v386
    %v736 = vunpack.c.l.b16 %v387
    %v737 = vunpack.c.h.b16 %v387
    %v738 = vunpack.c.l.b16 %v388
    %v739 = vunpack.c.h.b16 %v388
    %v740 = vunpack.c.l.b16 %v389
    %v741 = vunpack.c.h.b16 %v389
    %v742 = vunpack.c.l.b16 %v390
    %v743 = vunpack.c.h.b16 %v390
    %v744 = vunpack.c.l.b16 %v391
    %v745 = vunpack.c.h.b16 %v391
    %v746 = vunpack.c.l.b16 %v392
    %v747 = vunpack.c.h.b16 %v392
    %v748 = vunpack.c.l.b16 %v393
    %v749 = vunpack.c.h.b16 %v393
    %v750 = vunpack.c.l.b16 %v394
    %v751 = vunpack.c.h.b16 %v394
    %v752 = vunpack.c.l.b16 %v395
    %v753 = vunpack.c.h.b16 %v395
    %v754 = vunpack.c.l.b16 %v396
    %v755 = vunpack.c.h.b16 %v396
    %v756 = vunpack.c.l.b16 %v397
    %v757 = vunpack.c.h.b16 %v397
    %v758 = vunpack.c.l.b16 %v398
    %v759 = vunpack.c.h.b16 %v398
    %v760 = vunpack.c.l.b16 %v399
    %v761 = vunpack.c.h.b16 %v399
    %v762 = vunpack.c.l.b16 %v400
    %v763 = vunpack.c.h.b16 %v400
    %v764 = vunpack.c.l.b16 %v401
    %v765 = vunpack.c.h.b16 %v401
    %v766 = vunpack.c.l.b16 %v402
    %v767 = vunpack.c.h.b16 %v402
    %v768 = vunpack.c.l.b16 %v403
    %v769 = vunpack.c.h.b16 %v403
    %v770 = vunpack.c.l.b16 %v404
    %v771 = vunpack.c.h.b16 %v404
    %v772 = vunpack.c.l.b16 %v405
    %v773 = vunpack.c.h.b16 %v405
    %v774 = vunpack.c.l.b16 %v406
    %v775 = vunpack.c.h.b16 %v406
    %v776 = vunpack.c.l.b16 %v407
    %v777 = vunpack.c.h.b16 %v407
    %v778 = vunpack.c.l.b16 %v408
    %v779 = vunpack.c.h.b16 %v408
    %v780 = vunpack.c.l.b16 %v409
    %v781 = vunpack.c.h.b16 %v409
    %v782 = vunpack.c.l.b16 %v410
    %v783 = vunpack.c.h.b16 %v410
    %v784 = vunpack.c.l.b16 %v411
    %v785 = vunpack.c.h.b16 %v411
    %v786 = vunpack.c.l.b16 %v412
    %v787 = vunpack.c.h.b16 %v412
    %v788 = vunpack.c.l.b16 %v413
    %v789 = vunpack.c.h.b16 %v413
    %v790 = vunpack.c.l.b16 %v414
    %v791 = vunpack.c.h.b16 %v414
    %v792 = vunpack.c.l.b16 %v415
    %v793 = vunpack.c.h.b16 %v415
    %v794 = vunpack.c.l.b16 %v416
    %v795 = vunpack.c.h.b16 %v416
    %v796 = vunpack.c.l.b16 %v417
    %v797 = vunpack.c.h.b16 %v417
    %v798 = vunpack.c.l.b16 %v418
    %v799 = vunpack.c.h.b16 %v418
    %v800 = vunpack.c.l.b16 %v419
    %v801 = vunpack.c.h.b16 %v419
    %v802 = vunpack.c.l.b16 %v420
    %v803 = vunpack.c.h.b16 %v420
    %v804 = vunpack.c.l.b16 %v421
    %v805 = vunpack.c.h.b16 %v421
    %v806 = vunpack.c.l.b16 %v422
    %v807 = vunpack.c.h.b16 %v422
    %v808 = vunpack.c.l.b16 %v423
    %v809 = vunpack.c.h.b16 %v423
    %v810 = vunpack.c.l.b16 %v424
    %v811 = vunpack.c.h.b16 %v424
    %v812 = vunpack.c.l.b16 %v425
    %v813 = vunpack.c.h.b16 %v425
    %v814 = vunpack.c.l.b16 %v426
    %v815 = vunpack.c.h.b16 %v426
    %v816 = vunpack.c.l.b16 %v427
    %v817 = vunpack.c.h.b16 %v427
    %v818 = vunpack.c.l.b16 %v428
    %v819 = vunpack.c.h.b16 %v428
    %v820 = vunpack.c.l.b16 %v429
    %v821 = vunpack.c.h.b16 %v429
    %v822 = vunpack.c.l.b16 %v430
    %v823 = vunpack.c.h.b16 %v430
    %v824 = vunpack.c.l.b16 %v431
    %v825 = vunpack.c.h.b16 %v431
    %v826 = vpack.c.b16 %v574, %v570
    %v827 = vpack.c.b16 %v575, %v571
    %v828 = vpack.c.b16 %v576, %v572
    %v829 = vpack.c.b16 %v577, %v573
    %v830 = vpack.c.b16 %v582, %v578
    %v831 = vpack.c.b16 %v583, %v579
    %v832 = vpack.c.b16 %v584, %v580
    %v833 = vpack.c.b16 %v585, %v581
    %v834 = vpack.c.b16 %v590, %v586
    %v835 = vpack.c.b16 %v591, %v587
    %v836 = vpack.c.b16 %v592, %v588
    %v837 = vpack.c.b16 %v593, %v589
    %v838 = vpack.c.b16 %v598, %v594
    %v839 = vpack.c.b16 %v599, %v595
    %v840 = vpack.c.b16 %v600, %v596
    %v841 = vpack.c.b16 %v601, %v597
    %v842 = vpack.c.b16 %v606, %v602
    %v843 = vpack.c.b16 %v607, %v603
    %v844 = vpack.c.b16 %v608, %v604
    %v845 = vpack.c.b16 %v609, %v605
    %v846 = vpack.c.b16 %v614, %v610
    %v847 = vpack.c.b16 %v615, %v611
    %v848 = vpack.c.b16 %v616, %v612
    %v849 = vpack.c.b16 %v617, %v613
    %v850 = vpack.c.b16 %v622, %v618
    %v851 = vpack.c.b16 %v623, %v619
    %v852 = vpack.c.b16 %v624, %v620
    %v853 = vpack.c.b16 %v625, %v621
    %v854 = vpack.c.b16 %v630, %v626
    %v855 = vpack.c.b16 %v631, %v627
    %v856 = vpack.c.b16 %v632, %v628
    %v857 = vpack.c.b16 %v633, %v629
    %v858 = vpack.c.b16 %v638, %v634
    %v859 = vpack.c.b16 %v639, %v635
    %v860 = vpack.c.b16 %v640, %v636
    %v861 = vpack.c.b16 %v641, %v637
    %v862 = vpack.c.b16 %v646, %v642
    %v863 = vpack.c.b16 %v647, %v643
    %v864 = vpack.c.b16 %v648, %v644
    %v865 = vpack.c.b16 %v649, %v645
    %v866 = vpack.c.b16 %v654, %v650
    %v867 = vpack.c.b16 %v655, %v651
    %v868 = vpack.c.b16 %v656, %v652
    %v869 = vpack.c.b16 %v657, %v653
    %v870 = vpack.c.b16 %v662, %v658
    %v871 = vpack.c.b16 %v663, %v659
    %v872 = vpack.c.b16 %v664, %v660
    %v873 = vpack.c.b16 %v665, %v661
    %v874 = vpack.c.b16 %v670, %v666
    %v875 = vpack.c.b16 %v671, %v667
    %v876 = vpack.c.b16 %v672, %v668
    %v877 = vpack.c.b16 %v673, %v669
    %v878 = vpack.c.b16 %v678, %v674
    %v879 = vpack.c.b16 %v679, %v675
    %v880 = vpack.c.b16 %v680, %v676
    %v881 = vpack.c.b16 %v681, %v677
    %v882 = vpack.c.b16 %v686, %v682
    %v883 = vpack.c.b16 %v687, %v683
    %v884 = vpack.c.b16 %v688, %v684
    %v885 = vpack.c.b16 %v689, %v685
    %v886 = vpack.c.b16 %v694, %v690
    %v887 = vpack.c.b16 %v695, %v691
    %v888 = vpack.c.b16 %v696, %v692
    %v889 = vpack.c.b16 %v697, %v693
    %v890 = vpack.c.b16 %v702, %v698
    %v891 = vpack.c.b16 %v703, %v699
    %v892 = vpack.c.b16 %v704, %v700
    %v893 = vpack.c.b16 %v705, %v701
    %v894 = vpack.c.b16 %v710, %v706
    %v895 = vpack.c.b16 %v711, %v707
    %v896 = vpack.c.b16 %v712, %v708
    %v897 = vpack.c.b16 %v713, %v709
    %v898 = vpack.c.b16 %v718, %v714
    %v899 = vpack.c.b16 %v719, %v715
    %v900 = vpack.c.b16 %v720, %v716
    %v901 = vpack.c.b16 %v721, %v717
    %v902 = vpack.c.b16 %v726, %v722
    %v903 = vpack.c.b16 %v727, %v723
    %v904 = vpack.c.b16 %v728, %v724
    %v905 = vpack.c.b16 %v729, %v725
    %v906 = vpack.c.b16 %v734, %v730
    %v907 = vpack.c.b16 %v735, %v731
    %v908 = vpack.c.b16 %v736, %v732
    %v909 = vpack.c.b16 %v737, %v733
    %v910 = vpack.c.b16 %v742, %v738
    %v911 = vpack.c.b16 %v743, %v739
    %v912 = vpack.c.b16 %v744, %v740
    %v913 = vpack.c.b16 %v745, %v741
    %v914 = vpack.c.b16 %v750, %v746
    %v915 = vpack.c.b16 %v751, %v747
    %v916 = vpack.c.b16 %v752, %v748
    %v917 = vpack.c.b16 %v753, %v749
    %v918 = vpack.c.b16 %v758, %v754
    %v919 = vpack.c.b16 %v759, %v755
    %v920 = vpack.c.b16 %v760, %v756
    %v921 = vpack.c.b16 %v761, %v757
    %v922 = vpack.c.b16 %v766, %v762
    %v923 = vpack.c.b16 %v767, %v763
    %v924 = vpack.c.b16 %v768, %v764
    %v925 = vpack.c.b16 %v769, %v765
    %v926 = vpack.c.b16 %v774, %v770
    %v927 = vpack.c.b16 %v775, %v771
    %v928 = vpack.c.b16 %v776, %v772
    %v929 = vpack.c.b16 %v777, %v773
    %v930 = vpack.c.b16 %v782, %v778
    %v931 = vpack.c.b16 %v783, %v779
    %v932 = vpack.c.b16 %v784, %v780
    %v933 = vpack.c.b16 %v785, %v781
    %v934 = vpack.c.b16 %v790, %v786
    %v935 = vpack.c.b16 %v791, %v787
    %v936 = vpack.c.b16 %v792, %v788
    %v937 = vpack.c.b16 %v793, %v789
    %v938 = vpack.c.b16 %v798, %v794
    %v939 = vpack.c.b16 %v799, %v795
    %v940 = vpack.c.b16 %v800, %v796
    %v941 = vpack.c.b16 %v801, %v797
    %v942 = vpack.c.b16 %v806, %v802
    %v943 = vpack.c.b16 %v807, %v803
    %v944 = vpack.c.b16 %v808, %v804
    %v945 = vpack.c.b16 %v809, %v805
    %v946 = vpack.c.b16 %v814, %v810
    %v947 = vpack.c.b16 %v815, %v811
    %v948 = vpack.c.b16 %v816, %v812
    %v949 = vpack.c.b16 %v817, %v813
    %v950 = vpack.c.b16 %v822, %v818
    %v951 = vpack.c.b16 %v823, %v819
    %v952 = vpack.c.b16 %v824, %v820
    %v953 = vpack.c.b16 %v825, %v821
    %1082 = vmatpush.bf16.msra.mxu0 %v854
    %1083 = vmatpush.bf16.msra.mxu0 %v850
    %1084 = vmatpush.bf16.msra.mxu0 %v846
    %1085 = vmatpush.bf16.msra.mxu0 %v842
    %1086 = vmatpush.bf16.msra.mxu0 %v838
    %1087 = vmatpush.bf16.msra.mxu0 %v834
    %1088 = vmatpush.bf16.msra.mxu0 %v830
    %1089 = vmatpush.bf16.msra.mxu0 %v826
    %1090 = vmatmul.bf16.gmra.mxu0 %v300
    %v1091 = vpop.f32.mrf.mxu0
    %v1092 = vadd.f32 %v434, %v1091
    %v1093 = vpop.f32.mrf.mxu0
    %1094 = vdwg.mxu0
    %1095 = vmatpush.bf16.msra.mxu0 %v886
    %1096 = vmatpush.bf16.msra.mxu0 %v882
    %1097 = vmatpush.bf16.msra.mxu0 %v878
    %1098 = vmatpush.bf16.msra.mxu0 %v874
    %1099 = vmatpush.bf16.msra.mxu0 %v870
    %1100 = vmatpush.bf16.msra.mxu0 %v866
    %1101 = vmatpush.bf16.msra.mxu0 %v862
    %1102 = vmatpush.bf16.msra.mxu0 %v858
    %1103 = vmatmul.bf16.gmra.mxu0 %v301
    %v1104 = vpop.f32.mrf.mxu0
    %v1105 = vadd.f32 %v1092, %v1104
    %v1106 = vpop.f32.mrf.mxu0
    %1107 = vdwg.mxu0
    %1108 = vmatpush.bf16.msra.mxu0 %v918
    %1109 = vmatpush.bf16.msra.mxu0 %v914
    %1110 = vmatpush.bf16.msra.mxu0 %v910
    %1111 = vmatpush.bf16.msra.mxu0 %v906
    %1112 = vmatpush.bf16.msra.mxu0 %v902
    %1113 = vmatpush.bf16.msra.mxu0 %v898
    %1114 = vmatpush.bf16.msra.mxu0 %v894
    %1115 = vmatpush.bf16.msra.mxu0 %v890
    %1116 = vmatmul.bf16.gmra.mxu0 %v302
    %v1117 = vpop.f32.mrf.mxu0
    %v1118 = vadd.f32 %v1105, %v1117
    %v1119 = vpop.f32.mrf.mxu0
    %1120 = vdwg.mxu0
    %1121 = vmatpush.bf16.msra.mxu0 %v950
    %1122 = vmatpush.bf16.msra.mxu0 %v946
    %1123 = vmatpush.bf16.msra.mxu0 %v942
    %1124 = vmatpush.bf16.msra.mxu0 %v938
    %1125 = vmatpush.bf16.msra.mxu0 %v934
    %1126 = vmatpush.bf16.msra.mxu0 %v930
    %1127 = vmatpush.bf16.msra.mxu0 %v926
    %1128 = vmatpush.bf16.msra.mxu0 %v922
    %1129 = vmatmul.bf16.gmra.mxu0 %v303
    %v1130 = vpop.f32.mrf.mxu0
    %v1131 = vadd.f32 %v1118, %v1130
    %v1132 = vpop.f32.mrf.mxu0
    %1133 = vdwg.mxu0
    %1134 = vmatpush.bf16.msra.mxu0 %v855
    %1135 = vmatpush.bf16.msra.mxu0 %v851
    %1136 = vmatpush.bf16.msra.mxu0 %v847
    %1137 = vmatpush.bf16.msra.mxu0 %v843
    %1138 = vmatpush.bf16.msra.mxu0 %v839
    %1139 = vmatpush.bf16.msra.mxu0 %v835
    %1140 = vmatpush.bf16.msra.mxu0 %v831
    %1141 = vmatpush.bf16.msra.mxu0 %v827
    %1142 = vmatmul.bf16.gmra.mxu0 %v300
    %v1143 = vpop.f32.mrf.mxu0
    %v1144 = vadd.f32 %v435, %v1143
    %v1145 = vpop.f32.mrf.mxu0
    %1146 = vdwg.mxu0
    %1147 = vmatpush.bf16.msra.mxu0 %v887
    %1148 = vmatpush.bf16.msra.mxu0 %v883
    %1149 = vmatpush.bf16.msra.mxu0 %v879
    %1150 = vmatpush.bf16.msra.mxu0 %v875
    %1151 = vmatpush.bf16.msra.mxu0 %v871
    %1152 = vmatpush.bf16.msra.mxu0 %v867
    %1153 = vmatpush.bf16.msra.mxu0 %v863
    %1154 = vmatpush.bf16.msra.mxu0 %v859
    %1155 = vmatmul.bf16.gmra.mxu0 %v301
    %v1156 = vpop.f32.mrf.mxu0
    %v1157 = vadd.f32 %v1144, %v1156
    %v1158 = vpop.f32.mrf.mxu0
    %1159 = vdwg.mxu0
    %1160 = vmatpush.bf16.msra.mxu0 %v919
    %1161 = vmatpush.bf16.msra.mxu0 %v915
    %1162 = vmatpush.bf16.msra.mxu0 %v911
    %1163 = vmatpush.bf16.msra.mxu0 %v907
    %1164 = vmatpush.bf16.msra.mxu0 %v903
    %1165 = vmatpush.bf16.msra.mxu0 %v899
    %1166 = vmatpush.bf16.msra.mxu0 %v895
    %1167 = vmatpush.bf16.msra.mxu0 %v891
    %1168 = vmatmul.bf16.gmra.mxu0 %v302
    %v1169 = vpop.f32.mrf.mxu0
    %v1170 = vadd.f32 %v1157, %v1169
    %v1171 = vpop.f32.mrf.mxu0
    %1172 = vdwg.mxu0
    %1173 = vmatpush.bf16.msra.mxu0 %v951
    %1174 = vmatpush.bf16.msra.mxu0 %v947
    %1175 = vmatpush.bf16.msra.mxu0 %v943
    %1176 = vmatpush.bf16.msra.mxu0 %v939
    %1177 = vmatpush.bf16.msra.mxu0 %v935
    %1178 = vmatpush.bf16.msra.mxu0 %v931
    %1179 = vmatpush.bf16.msra.mxu0 %v927
    %1180 = vmatpush.bf16.msra.mxu0 %v923
    %1181 = vmatmul.bf16.gmra.mxu0 %v303
    %v1182 = vpop.f32.mrf.mxu0
    %v1183 = vadd.f32 %v1170, %v1182
    %v1184 = vpop.f32.mrf.mxu0
    %1185 = vdwg.mxu0
    %1186 = vmatpush.bf16.msra.mxu0 %v856
    %1187 = vmatpush.bf16.msra.mxu0 %v852
    %1188 = vmatpush.bf16.msra.mxu0 %v848
    %1189 = vmatpush.bf16.msra.mxu0 %v844
    %1190 = vmatpush.bf16.msra.mxu0 %v840
    %1191 = vmatpush.bf16.msra.mxu0 %v836
    %1192 = vmatpush.bf16.msra.mxu0 %v832
    %1193 = vmatpush.bf16.msra.mxu0 %v828
    %1194 = vmatmul.bf16.gmra.mxu0 %v300
    %v1195 = vpop.f32.mrf.mxu0
    %v1196 = vadd.f32 %v436, %v1195
    %v1197 = vpop.f32.mrf.mxu0
    %1198 = vdwg.mxu0
    %1199 = vmatpush.bf16.msra.mxu0 %v888
    %1200 = vmatpush.bf16.msra.mxu0 %v884
    %1201 = vmatpush.bf16.msra.mxu0 %v880
    %1202 = vmatpush.bf16.msra.mxu0 %v876
    %1203 = vmatpush.bf16.msra.mxu0 %v872
    %1204 = vmatpush.bf16.msra.mxu0 %v868
    %1205 = vmatpush.bf16.msra.mxu0 %v864
    %1206 = vmatpush.bf16.msra.mxu0 %v860
    %1207 = vmatmul.bf16.gmra.mxu0 %v301
    %v1208 = vpop.f32.mrf.mxu0
    %v1209 = vadd.f32 %v1196, %v1208
    %v1210 = vpop.f32.mrf.mxu0
    %1211 = vdwg.mxu0
    %1212 = vmatpush.bf16.msra.mxu0 %v920
    %1213 = vmatpush.bf16.msra.mxu0 %v916
    %1214 = vmatpush.bf16.msra.mxu0 %v912
    %1215 = vmatpush.bf16.msra.mxu0 %v908
    %1216 = vmatpush.bf16.msra.mxu0 %v904
    %1217 = vmatpush.bf16.msra.mxu0 %v900
    %1218 = vmatpush.bf16.msra.mxu0 %v896
    %1219 = vmatpush.bf16.msra.mxu0 %v892
    %1220 = vmatmul.bf16.gmra.mxu0 %v302
    %v1221 = vpop.f32.mrf.mxu0
    %v1222 = vadd.f32 %v1209, %v1221
    %v1223 = vpop.f32.mrf.mxu0
    %1224 = vdwg.mxu0
    %1225 = vmatpush.bf16.msra.mxu0 %v952
    %1226 = vmatpush.bf16.msra.mxu0 %v948
    %1227 = vmatpush.bf16.msra.mxu0 %v944
    %1228 = vmatpush.bf16.msra.mxu0 %v940
    %1229 = vmatpush.bf16.msra.mxu0 %v936
    %1230 = vmatpush.bf16.msra.mxu0 %v932
    %1231 = vmatpush.bf16.msra.mxu0 %v928
    %1232 = vmatpush.bf16.msra.mxu0 %v924
    %1233 = vmatmul.bf16.gmra.mxu0 %v303
    %v1234 = vpop.f32.mrf.mxu0
    %v1235 = vadd.f32 %v1222, %v1234
    %v1236 = vpop.f32.mrf.mxu0
    %1237 = vdwg.mxu0
    %1238 = vmatpush.bf16.msra.mxu0 %v857
    %1239 = vmatpush.bf16.msra.mxu0 %v853
    %1240 = vmatpush.bf16.msra.mxu0 %v849
    %1241 = vmatpush.bf16.msra.mxu0 %v845
    %1242 = vmatpush.bf16.msra.mxu0 %v841
    %1243 = vmatpush.bf16.msra.mxu0 %v837
    %1244 = vmatpush.bf16.msra.mxu0 %v833
    %1245 = vmatpush.bf16.msra.mxu0 %v829
    %1246 = vmatmul.bf16.gmra.mxu0 %v300
    %v1247 = vpop.f32.mrf.mxu0
    %v1248 = vadd.f32 %v437, %v1247
    %v1249 = vpop.f32.mrf.mxu0
    %1250 = vdwg.mxu0
    %1251 = vmatpush.bf16.msra.mxu0 %v889
    %1252 = vmatpush.bf16.msra.mxu0 %v885
    %1253 = vmatpush.bf16.msra.mxu0 %v881
    %1254 = vmatpush.bf16.msra.mxu0 %v877
    %1255 = vmatpush.bf16.msra.mxu0 %v873
    %1256 = vmatpush.bf16.msra.mxu0 %v869
    %1257 = vmatpush.bf16.msra.mxu0 %v865
    %1258 = vmatpush.bf16.msra.mxu0 %v861
    %1259 = vmatmul.bf16.gmra.mxu0 %v301
    %v1260 = vpop.f32.mrf.mxu0
    %v1261 = vadd.f32 %v1248, %v1260
    %v1262 = vpop.f32.mrf.mxu0
    %1263 = vdwg.mxu0
    %1264 = vmatpush.bf16.msra.mxu0 %v921
    %1265 = vmatpush.bf16.msra.mxu0 %v917
    %1266 = vmatpush.bf16.msra.mxu0 %v913
    %1267 = vmatpush.bf16.msra.mxu0 %v909
    %1268 = vmatpush.bf16.msra.mxu0 %v905
    %1269 = vmatpush.bf16.msra.mxu0 %v901
    %1270 = vmatpush.bf16.msra.mxu0 %v897
    %1271 = vmatpush.bf16.msra.mxu0 %v893
    %1272 = vmatmul.bf16.gmra.mxu0 %v302
    %v1273 = vpop.f32.mrf.mxu0
    %v1274 = vadd.f32 %v1261, %v1273
    %v1275 = vpop.f32.mrf.mxu0
    %1276 = vdwg.mxu0
    %1277 = vmatpush.bf16.msra.mxu0 %v953
    %1278 = vmatpush.bf16.msra.mxu0 %v949
    %1279 = vmatpush.bf16.msra.mxu0 %v945
    %1280 = vmatpush.bf16.msra.mxu0 %v941
    %1281 = vmatpush.bf16.msra.mxu0 %v937
    %1282 = vmatpush.bf16.msra.mxu0 %v933
    %1283 = vmatpush.bf16.msra.mxu0 %v929
    %1284 = vmatpush.bf16.msra.mxu0 %v925
    %1285 = vmatmul.bf16.gmra.mxu0 %v303
    %v1286 = vpop.f32.mrf.mxu0
    %v1287 = vadd.f32 %v1274, %v1286
    %v1288 = vpop.f32.mrf.mxu0
    %1289 = vdwg.mxu0
    %v1290 = vmax.f32 %v1131, 0.0
    %v1291 = vmax.f32 %v1183, 0.0
    %v1292 = vmax.f32 %v1235, 0.0
    %v1293 = vmax.f32 %v1287, 0.0
    %v1294 = vpack.c.bf16 %v1290, %v1290
    %v1295 = vpack.c.bf16 %v1291, %v1291
    %v1296 = vpack.c.bf16 %v1292, %v1292
    %v1297 = vpack.c.bf16 %v1293, %v1293
    %v1298 = vld [vmem:[#allocation7] sm:$0xf]
    %v1299 = vld [vmem:[#allocation7 + $0x4] sm:$0xf]
    %v1300 = vld [vmem:[#allocation7 + $0x8] sm:$0xf]
    %v1301 = vld [vmem:[#allocation7 + $0xc] sm:$0xf]
    %v1302 = vld [vmem:[#allocation7 + $0x10] sm:$0xf]
    %v1303 = vld [vmem:[#allocation7 + $0x14] sm:$0xf]
    %v1304 = vld [vmem:[#allocation7 + $0x18] sm:$0xf]
    %v1305 = vld [vmem:[#allocation7 + $0x1c] sm:$0xf]
    %v1306 = vld [vmem:[#allocation7 + $0x20] sm:$0xf]
    %v1307 = vld [vmem:[#allocation7 + $0x24] sm:$0xf]
    %v1308 = vld [vmem:[#allocation7 + $0x28] sm:$0xf]
    %v1309 = vld [vmem:[#allocation7 + $0x2c] sm:$0xf]
    %v1310 = vld [vmem:[#allocation7 + $0x30] sm:$0xf]
    %v1311 = vld [vmem:[#allocation7 + $0x34] sm:$0xf]
    %v1312 = vld [vmem:[#allocation7 + $0x38] sm:$0xf]
    %v1313 = vld [vmem:[#allocation7 + $0x3c] sm:$0xf]
    %v1314 = vld [vmem:[#allocation7 + $0x40] sm:$0xf]
    %v1315 = vld [vmem:[#allocation7 + $0x44] sm:$0xf]
    %v1316 = vld [vmem:[#allocation7 + $0x48] sm:$0xf]
    %v1317 = vld [vmem:[#allocation7 + $0x4c] sm:$0xf]
    %v1318 = vld [vmem:[#allocation7 + $0x50] sm:$0xf]
    %v1319 = vld [vmem:[#allocation7 + $0x54] sm:$0xf]
    %v1320 = vld [vmem:[#allocation7 + $0x58] sm:$0xf]
    %v1321 = vld [vmem:[#allocation7 + $0x5c] sm:$0xf]
    %v1322 = vld [vmem:[#allocation7 + $0x60] sm:$0xf]
    %v1323 = vld [vmem:[#allocation7 + $0x64] sm:$0xf]
    %v1324 = vld [vmem:[#allocation7 + $0x68] sm:$0xf]
    %v1325 = vld [vmem:[#allocation7 + $0x6c] sm:$0xf]
    %v1326 = vld [vmem:[#allocation7 + $0x70] sm:$0xf]
    %v1327 = vld [vmem:[#allocation7 + $0x74] sm:$0xf]
    %v1328 = vld [vmem:[#allocation7 + $0x78] sm:$0xf]
    %v1329 = vld [vmem:[#allocation7 + $0x7c] sm:$0xf]
    %v1330 = vld [vmem:[#allocation7 + $0x80] sm:$0xf]
    %v1331 = vld [vmem:[#allocation7 + $0x84] sm:$0xf]
    %v1332 = vld [vmem:[#allocation7 + $0x88] sm:$0xf]
    %v1333 = vld [vmem:[#allocation7 + $0x8c] sm:$0xf]
    %v1334 = vld [vmem:[#allocation7 + $0x90] sm:$0xf]
    %v1335 = vld [vmem:[#allocation7 + $0x94] sm:$0xf]
    %v1336 = vld [vmem:[#allocation7 + $0x98] sm:$0xf]
    %v1337 = vld [vmem:[#allocation7 + $0x9c] sm:$0xf]
    %v1338 = vld [vmem:[#allocation7 + $0xa0] sm:$0xf]
    %v1339 = vld [vmem:[#allocation7 + $0xa4] sm:$0xf]
    %v1340 = vld [vmem:[#allocation7 + $0xa8] sm:$0xf]
    %v1341 = vld [vmem:[#allocation7 + $0xac] sm:$0xf]
    %v1342 = vld [vmem:[#allocation7 + $0xb0] sm:$0xf]
    %v1343 = vld [vmem:[#allocation7 + $0xb4] sm:$0xf]
    %v1344 = vld [vmem:[#allocation7 + $0xb8] sm:$0xf]
    %v1345 = vld [vmem:[#allocation7 + $0xbc] sm:$0xf]
    %v1346 = vld [vmem:[#allocation7 + $0xc0] sm:$0xf]
    %v1347 = vld [vmem:[#allocation7 + $0xc4] sm:$0xf]
    %v1348 = vld [vmem:[#allocation7 + $0xc8] sm:$0xf]
    %v1349 = vld [vmem:[#allocation7 + $0xcc] sm:$0xf]
    %v1350 = vld [vmem:[#allocation7 + $0xd0] sm:$0xf]
    %v1351 = vld [vmem:[#allocation7 + $0xd4] sm:$0xf]
    %v1352 = vld [vmem:[#allocation7 + $0xd8] sm:$0xf]
    %v1353 = vld [vmem:[#allocation7 + $0xdc] sm:$0xf]
    %v1354 = vld [vmem:[#allocation7 + $0xe0] sm:$0xf]
    %v1355 = vld [vmem:[#allocation7 + $0xe4] sm:$0xf]
    %v1356 = vld [vmem:[#allocation7 + $0xe8] sm:$0xf]
    %v1357 = vld [vmem:[#allocation7 + $0xec] sm:$0xf]
    %v1358 = vld [vmem:[#allocation7 + $0xf0] sm:$0xf]
    %v1359 = vld [vmem:[#allocation7 + $0xf4] sm:$0xf]
    %v1360 = vld [vmem:[#allocation7 + $0xf8] sm:$0xf]
    %v1361 = vld [vmem:[#allocation7 + $0xfc] sm:$0xf]
    %v1362 = vld [vmem:[%s6] sm:$0x1]
    %v1364 = vperm.slane %v1362, 0
    %v1430 = vunpack.c.l.b16 %v1298
    %v1431 = vunpack.c.l.b16 %v1299
    %v1432 = vunpack.c.l.b16 %v1300
    %v1433 = vunpack.c.l.b16 %v1301
    %v1434 = vunpack.c.l.b16 %v1302
    %v1435 = vunpack.c.l.b16 %v1303
    %v1436 = vunpack.c.l.b16 %v1304
    %v1437 = vunpack.c.l.b16 %v1305
    %v1438 = vunpack.c.l.b16 %v1306
    %v1439 = vunpack.c.l.b16 %v1307
    %v1440 = vunpack.c.l.b16 %v1308
    %v1441 = vunpack.c.l.b16 %v1309
    %v1442 = vunpack.c.l.b16 %v1310
    %v1443 = vunpack.c.l.b16 %v1311
    %v1444 = vunpack.c.l.b16 %v1312
    %v1445 = vunpack.c.l.b16 %v1313
    %v1446 = vunpack.c.l.b16 %v1314
    %v1447 = vunpack.c.l.b16 %v1315
    %v1448 = vunpack.c.l.b16 %v1316
    %v1449 = vunpack.c.l.b16 %v1317
    %v1450 = vunpack.c.l.b16 %v1318
    %v1451 = vunpack.c.l.b16 %v1319
    %v1452 = vunpack.c.l.b16 %v1320
    %v1453 = vunpack.c.l.b16 %v1321
    %v1454 = vunpack.c.l.b16 %v1322
    %v1455 = vunpack.c.l.b16 %v1323
    %v1456 = vunpack.c.l.b16 %v1324
    %v1457 = vunpack.c.l.b16 %v1325
    %v1458 = vunpack.c.l.b16 %v1326
    %v1459 = vunpack.c.l.b16 %v1327
    %v1460 = vunpack.c.l.b16 %v1328
    %v1461 = vunpack.c.l.b16 %v1329
    %v1462 = vunpack.c.l.b16 %v1330
    %v1463 = vunpack.c.l.b16 %v1331
    %v1464 = vunpack.c.l.b16 %v1332
    %v1465 = vunpack.c.l.b16 %v1333
    %v1466 = vunpack.c.l.b16 %v1334
    %v1467 = vunpack.c.l.b16 %v1335
    %v1468 = vunpack.c.l.b16 %v1336
    %v1469 = vunpack.c.l.b16 %v1337
    %v1470 = vunpack.c.l.b16 %v1338
    %v1471 = vunpack.c.l.b16 %v1339
    %v1472 = vunpack.c.l.b16 %v1340
    %v1473 = vunpack.c.l.b16 %v1341
    %v1474 = vunpack.c.l.b16 %v1342
    %v1475 = vunpack.c.l.b16 %v1343
    %v1476 = vunpack.c.l.b16 %v1344
    %v1477 = vunpack.c.l.b16 %v1345
    %v1478 = vunpack.c.l.b16 %v1346
    %v1479 = vunpack.c.l.b16 %v1347
    %v1480 = vunpack.c.l.b16 %v1348
    %v1481 = vunpack.c.l.b16 %v1349
    %v1482 = vunpack.c.l.b16 %v1350
    %v1483 = vunpack.c.l.b16 %v1351
    %v1484 = vunpack.c.l.b16 %v1352
    %v1485 = vunpack.c.l.b16 %v1353
    %v1486 = vunpack.c.l.b16 %v1354
    %v1487 = vunpack.c.l.b16 %v1355
    %v1488 = vunpack.c.l.b16 %v1356
    %v1489 = vunpack.c.l.b16 %v1357
    %v1490 = vunpack.c.l.b16 %v1358
    %v1491 = vunpack.c.l.b16 %v1359
    %v1492 = vunpack.c.l.b16 %v1360
    %v1493 = vunpack.c.l.b16 %v1361
    %v1494 = vpack.c.b16 %v1431, %v1430
    %v1495 = vpack.c.b16 %v1433, %v1432
    %v1496 = vpack.c.b16 %v1435, %v1434
    %v1497 = vpack.c.b16 %v1437, %v1436
    %v1498 = vpack.c.b16 %v1439, %v1438
    %v1499 = vpack.c.b16 %v1441, %v1440
    %v1500 = vpack.c.b16 %v1443, %v1442
    %v1501 = vpack.c.b16 %v1445, %v1444
    %v1502 = vpack.c.b16 %v1447, %v1446
    %v1503 = vpack.c.b16 %v1449, %v1448
    %v1504 = vpack.c.b16 %v1451, %v1450
    %v1505 = vpack.c.b16 %v1453, %v1452
    %v1506 = vpack.c.b16 %v1455, %v1454
    %v1507 = vpack.c.b16 %v1457, %v1456
    %v1508 = vpack.c.b16 %v1459, %v1458
    %v1509 = vpack.c.b16 %v1461, %v1460
    %v1510 = vpack.c.b16 %v1463, %v1462
    %v1511 = vpack.c.b16 %v1465, %v1464
    %v1512 = vpack.c.b16 %v1467, %v1466
    %v1513 = vpack.c.b16 %v1469, %v1468
    %v1514 = vpack.c.b16 %v1471, %v1470
    %v1515 = vpack.c.b16 %v1473, %v1472
    %v1516 = vpack.c.b16 %v1475, %v1474
    %v1517 = vpack.c.b16 %v1477, %v1476
    %v1518 = vpack.c.b16 %v1479, %v1478
    %v1519 = vpack.c.b16 %v1481, %v1480
    %v1520 = vpack.c.b16 %v1483, %v1482
    %v1521 = vpack.c.b16 %v1485, %v1484
    %v1522 = vpack.c.b16 %v1487, %v1486
    %v1523 = vpack.c.b16 %v1489, %v1488
    %v1524 = vpack.c.b16 %v1491, %v1490
    %v1525 = vpack.c.b16 %v1493, %v1492
    %1558 = vmatpush.bf16.msra.mxu0 %v1501
    %1559 = vmatpush.bf16.msra.mxu0 %v1500
    %1560 = vmatpush.bf16.msra.mxu0 %v1499
    %1561 = vmatpush.bf16.msra.mxu0 %v1498
    %1562 = vmatpush.bf16.msra.mxu0 %v1497
    %1563 = vmatpush.bf16.msra.mxu0 %v1496
    %1564 = vmatpush.bf16.msra.mxu0 %v1495
    %1565 = vmatpush.bf16.msra.mxu0 %v1494
    %1566 = vmatmul.bf16.gmra.mxu0 %v1294
    %v1567 = vpop.f32.mrf.mxu0
    %v1568 = vadd.f32 %v1364, %v1567
    %v1569 = vpop.f32.mrf.mxu0
    %1570 = vdwg.mxu0
    %1571 = vmatpush.bf16.msra.mxu0 %v1509
    %1572 = vmatpush.bf16.msra.mxu0 %v1508
    %1573 = vmatpush.bf16.msra.mxu0 %v1507
    %1574 = vmatpush.bf16.msra.mxu0 %v1506
    %1575 = vmatpush.bf16.msra.mxu0 %v1505
    %1576 = vmatpush.bf16.msra.mxu0 %v1504
    %1577 = vmatpush.bf16.msra.mxu0 %v1503
    %1578 = vmatpush.bf16.msra.mxu0 %v1502
    %1579 = vmatmul.bf16.gmra.mxu0 %v1295
    %v1580 = vpop.f32.mrf.mxu0
    %v1581 = vadd.f32 %v1568, %v1580
    %v1582 = vpop.f32.mrf.mxu0
    %1583 = vdwg.mxu0
    %1584 = vmatpush.bf16.msra.mxu0 %v1517
    %1585 = vmatpush.bf16.msra.mxu0 %v1516
    %1586 = vmatpush.bf16.msra.mxu0 %v1515
    %1587 = vmatpush.bf16.msra.mxu0 %v1514
    %1588 = vmatpush.bf16.msra.mxu0 %v1513
    %1589 = vmatpush.bf16.msra.mxu0 %v1512
    %1590 = vmatpush.bf16.msra.mxu0 %v1511
    %1591 = vmatpush.bf16.msra.mxu0 %v1510
    %1592 = vmatmul.bf16.gmra.mxu0 %v1296
    %v1593 = vpop.f32.mrf.mxu0
    %v1594 = vadd.f32 %v1581, %v1593
    %v1595 = vpop.f32.mrf.mxu0
    %1596 = vdwg.mxu0
    %1597 = vmatpush.bf16.msra.mxu0 %v1525
    %1598 = vmatpush.bf16.msra.mxu0 %v1524
    %1599 = vmatpush.bf16.msra.mxu0 %v1523
    %1600 = vmatpush.bf16.msra.mxu0 %v1522
    %1601 = vmatpush.bf16.msra.mxu0 %v1521
    %1602 = vmatpush.bf16.msra.mxu0 %v1520
    %1603 = vmatpush.bf16.msra.mxu0 %v1519
    %1604 = vmatpush.bf16.msra.mxu0 %v1518
    %1605 = vmatmul.bf16.gmra.mxu0 %v1297
    %v1606 = vpop.f32.mrf.mxu0
    %v1607 = vadd.f32 %v1594, %v1606
    %v1608 = vpop.f32.mrf.mxu0
    %1609 = vdwg.mxu0
    %v1610 = vmax.f32 %v1607, 0.0
    %v1611 = vpack.c.bf16 %v1610, %v1610
    %v1612 = vld [vmem:[%s7] sm:$0xf]
    %v1613 = vld [vmem:[%s7 + $0x4] sm:$0xf]
    %v1614 = vld [vmem:[%s7 + $0x8] sm:$0xf]
    %v1615 = vld [vmem:[%s7 + $0xc] sm:$0xf]
    %v1616 = vld [vmem:[%s7 + $0x10] sm:$0xf]
    %v1617 = vld [vmem:[%s7 + $0x14] sm:$0xf]
    %v1618 = vld [vmem:[%s7 + $0x18] sm:$0xf]
    %v1619 = vld [vmem:[%s7 + $0x1c] sm:$0xf]
    %v1620 = vld [vmem:[%s7 + $0x20] sm:$0xf]
    %v1621 = vld [vmem:[%s7 + $0x24] sm:$0xf]
    %v1622 = vld [vmem:[%s7 + $0x28] sm:$0xf]
    %v1623 = vld [vmem:[%s7 + $0x2c] sm:$0xf]
    %v1624 = vld [vmem:[%s7 + $0x30] sm:$0xf]
    %v1625 = vld [vmem:[%s7 + $0x34] sm:$0xf]
    %v1626 = vld [vmem:[%s7 + $0x38] sm:$0xf]
    %v1627 = vld [vmem:[%s7 + $0x3c] sm:$0xf]
    %v1628 = vld [vmem:[%s8] sm:$0x1]
    %v1630 = vperm.slane %v1628, 0
    %v1648 = vunpack.c.l.b16 %v1612
    %v1649 = vunpack.c.l.b16 %v1613
    %v1650 = vunpack.c.l.b16 %v1614
    %v1651 = vunpack.c.l.b16 %v1615
    %v1652 = vunpack.c.l.b16 %v1616
    %v1653 = vunpack.c.l.b16 %v1617
    %v1654 = vunpack.c.l.b16 %v1618
    %v1655 = vunpack.c.l.b16 %v1619
    %v1656 = vunpack.c.l.b16 %v1620
    %v1657 = vunpack.c.l.b16 %v1621
    %v1658 = vunpack.c.l.b16 %v1622
    %v1659 = vunpack.c.l.b16 %v1623
    %v1660 = vunpack.c.l.b16 %v1624
    %v1661 = vunpack.c.l.b16 %v1625
    %v1662 = vunpack.c.l.b16 %v1626
    %v1663 = vunpack.c.l.b16 %v1627
    %v1664 = vpack.c.b16 %v1649, %v1648
    %v1665 = vpack.c.b16 %v1651, %v1650
    %v1666 = vpack.c.b16 %v1653, %v1652
    %v1667 = vpack.c.b16 %v1655, %v1654
    %v1668 = vpack.c.b16 %v1657, %v1656
    %v1669 = vpack.c.b16 %v1659, %v1658
    %v1670 = vpack.c.b16 %v1661, %v1660
    %v1671 = vpack.c.b16 %v1663, %v1662
    %1680 = vmatpush.bf16.msra.mxu0 %v1671
    %1681 = vmatpush.bf16.msra.mxu0 %v1670
    %1682 = vmatpush.bf16.msra.mxu0 %v1669
    %1683 = vmatpush.bf16.msra.mxu0 %v1668
    %1684 = vmatpush.bf16.msra.mxu0 %v1667
    %1685 = vmatpush.bf16.msra.mxu0 %v1666
    %1686 = vmatpush.bf16.msra.mxu0 %v1665
    %1687 = vmatpush.bf16.msra.mxu0 %v1664
    %1688 = vmatmul.bf16.gmra.mxu0 %v1611
    %v1689 = vpop.f32.mrf.mxu0
    %v1690 = vadd.f32 %v1630, %v1689
    %v1691 = vpop.f32.mrf.mxu0
    %1692 = vdwg.mxu0
    %1693 = vst [vmem:[#allocation8] sm:$0x3] %v1690
    // Predicated region
    $region50: #{sim2net_forward.1} parent=1 // pred_check
      _
    $region51: #{sim2net_forward.1} parent=1 // pred_check_branch
      %1695 = sbr.rel (0) target = $region53
    $region52: #{sim2net_forward.1} parent=1 // pred_region
      %1697 = vsyncadd [#allocation4], 0
      %s1699 = sshll.u32 [#allocation8], 4
      %s1700 = int_to_ptr.vmem [resolvable:$true] %s1699
      %s1701 = sshll.u32 %s9, 4
      %s1702 = int_to_ptr.hbm [resolvable:$true] %s1701
      %1704 = dma.vmem_to_hbm [thread:$0]  %s1700, 32, %s1702, [#allocation4]
    $region53: #{sim2net_forward.1} parent=1 // pred_fallthru
      _
    // Predicated region
    $region54: #{sim2net_forward.1} parent=1 // pred_check
      _
    $region55: #{sim2net_forward.1} parent=1 // pred_check_branch
      %1706 = sbr.rel (0) target = $region57
    $region56: #{sim2net_forward.1} parent=1 // pred_region
      %1708 = dma.done [#allocation4], 32
    $region57: #{sim2net_forward.1} parent=1 // pred_fallthru
      _
    %1709 = vsyncpa [#allocation3], 1
    %1710 = vsyncpa [#allocation6], 1
    %1711 = vsyncpa [#allocation4], 1

</llo_original>
